<compile_context>
chip_gen: v5e
topology: v5e:2x2
jax: 0.10.0
libtpu: 0.0.40
codegen_flags: <defaults>
</compile_context>

<pallas_src>
import functools

import jax
import jax.numpy as jnp
from jax.experimental import pallas as pl
from jax.experimental.pallas import tpu as pltpu


def make_rul_lstm_kernel(num_layers, Bp, T, H, out_dim):
    """Builds the kernel body; all shapes / layer count / slab offsets are static."""
    L = num_layers
    H2 = H // 2

    # Static row offsets inside the bf16 weight slab (must match pack_params).
    #   [ w_hh0 (H) | for l>=1: w_ih_l (H), w_hh_l (H) | fc1w (H) | fc2w (H2) ]
    off_layer = [None]
    o = H
    for _ in range(1, L):
        off_layer.append(o)
        o += 2 * H
    off_fc1 = o
    off_fc2 = o + H

    def lstm_cell(gates, c_prev):
        # One EUP pass per non-linearity over the full 4H-wide gate vector,
        # then static lane slices (PyTorch gate order i, f, g, o).
        sg = jax.nn.sigmoid(gates)
        th = jnp.tanh(gates)
        i_g = sg[:, 0:H]
        f_g = sg[:, H:2 * H]
        g_g = th[:, 2 * H:3 * H]
        o_g = sg[:, 3 * H:4 * H]
        c_new = f_g * c_prev + i_g * g_g
        h_new = o_g * jnp.tanh(c_new)
        return h_new, c_new

    def kernel(x_ref, ws_ref, bs_ref, out_ref):
        # x_ref : (T, Bp, 1) f32, time-major
        # ws_ref: (Rw, 4H)  bf16 weight slab
        # bs_ref: (L+3, 4H) f32 row-vector slab
        #   row 0 = w_ih0, row 1 = b0, row 1+l = bias of layer l (l>=1),
        #   row L+1 = fc1b (lane-padded), row L+2 = fc2b (lane-padded)

        # ---- layer-0 input projection (+ bias) for all timesteps at once ----
        # input_size == 1 (x.unsqueeze(2)): pure broadcast outer product, f32.
        w_ih0 = bs_ref[0:1, :]                            # (1, 4H)
        b0 = bs_ref[1:2, :]                               # (1, 4H)
        gx0 = x_ref[...] * w_ih0 + b0                     # (T, Bp, 4H)

        # ---- hoist only the recurrent weights/biases (small, bf16) ----------
        w_hh0 = ws_ref[0:H, :]                            # (H, 4H) bf16
        w_ih_l, w_hh_l, b_l = [], [], []
        for l in range(1, L):
            o_l = off_layer[l]
            w_ih_l.append(ws_ref[o_l:o_l + H, :])         # (H, 4H) bf16
            w_hh_l.append(ws_ref[o_l + H:o_l + 2 * H, :])  # (H, 4H) bf16
            b_l.append(bs_ref[1 + l:2 + l, :])            # (1, 4H) f32

        # ---- recurrence, fully unrolled (T and L are small and static) ------
        h = [jnp.zeros((Bp, H), jnp.float32) for _ in range(L)]
        c = [jnp.zeros((Bp, H), jnp.float32) for _ in range(L)]

        for t in range(T):
            # layer 0: precomputed f32 input projection + bf16-operand MXU dot
            gates = gx0[t] + jnp.dot(h[0].astype(jnp.bfloat16), w_hh0,
                                     preferred_element_type=jnp.float32)
            h[0], c[0] = lstm_cell(gates, c[0])
            layer_in = h[0]
            # layers >= 1: two independent dots (pipeline back-to-back on MXU)
            for l in range(1, L):
                gates = (jnp.dot(layer_in.astype(jnp.bfloat16), w_ih_l[l - 1],
                                 preferred_element_type=jnp.float32)
                         + jnp.dot(h[l].astype(jnp.bfloat16), w_hh_l[l - 1],
                                   preferred_element_type=jnp.float32)
                         + b_l[l - 1])
                h[l], c[l] = lstm_cell(gates, c[l])
                # TODO(synk): inter-layer LSTM dropout is identity at inference.
                layer_in = h[l]

        # ---- head: fc1 -> ReLU -> (dropout = identity) -> fc2 ---------------
        # head weights are loaded only here (no live ranges across the loop)
        fc1w = ws_ref[off_fc1:off_fc1 + H, 0:H2]          # (H, H2)  bf16
        fc1b = bs_ref[L + 1:L + 2, 0:H2]                  # (1, H2)  f32
        fc2w = ws_ref[off_fc2:off_fc2 + H2, 0:out_dim]    # (H2, out) bf16
        fc2b = bs_ref[L + 2:L + 3, 0:out_dim]             # (1, out)  f32

        h_last = h[L - 1]                                 # == out[:, -1, :]
        z = jnp.maximum(
            jnp.dot(h_last.astype(jnp.bfloat16), fc1w,
                    preferred_element_type=jnp.float32) + fc1b, 0.0)
        out_ref[...] = (jnp.dot(z.astype(jnp.bfloat16), fc2w,
                                preferred_element_type=jnp.float32) + fc2b)

    return kernel


def rul_lstm_forward(x, w_slab, b_slab, *, hidden_size, num_layers, output_size):
    """x: (B, T) float32. w_slab/b_slab: packed parameter slabs from pack_params()."""
    B, T = x.shape
    H = hidden_size
    Bp = ((max(B, 8) + 7) // 8) * 8                       # pad batch to sublane count

    # glue: time-major + trailing feature dim (the unsqueeze(2)); zero-pad the
    # batch axis — batch rows are independent, padded rows are discarded.
    x_tm = jnp.transpose(x, (1, 0))[:, :, None]           # (T, B, 1)
    if Bp != B:
        x_tm = jnp.pad(x_tm, ((0, 0), (0, Bp - B), (0, 0)))

    kernel = make_rul_lstm_kernel(num_layers, Bp, T, H, output_size)

    out = pl.pallas_call(
        kernel,
        out_shape=jax.ShapeDtypeStruct((Bp, output_size), jnp.float32),
        in_specs=[pl.BlockSpec(memory_space=pltpu.MemorySpace.VMEM)] * 3,
        out_specs=pl.BlockSpec(memory_space=pltpu.MemorySpace.VMEM),
    )(x_tm, w_slab, b_slab)
    return out[:B]


def init_params(key, input_size, hidden_size, num_layers, output_size):
    """PyTorch-style uniform(-1/sqrt(H), 1/sqrt(H)) init, 'torch layout':
    per layer (w_ih (in,4H), w_hh (H,4H), b (1,4H) with b_ih+b_hh folded),
    then fc1w, fc1b, fc2w, fc2b."""
    H = hidden_size
    k = 1.0 / jnp.sqrt(jnp.float32(H))
    params = []
    keys = jax.random.split(key, 4 * num_layers + 4)
    ki = 0
    for l in range(num_layers):
        in_l = input_size if l == 0 else H
        w_ih = jax.random.uniform(keys[ki], (in_l, 4 * H), jnp.float32, -k, k); ki += 1
        w_hh = jax.random.uniform(keys[ki], (H, 4 * H), jnp.float32, -k, k); ki += 1
        b_ih = jax.random.uniform(keys[ki], (1, 4 * H), jnp.float32, -k, k); ki += 1
        b_hh = jax.random.uniform(keys[ki], (1, 4 * H), jnp.float32, -k, k); ki += 1
        params += [w_ih, w_hh, b_ih + b_hh]
    H2 = H // 2
    k1 = 1.0 / jnp.sqrt(jnp.float32(H))
    fc1w = jax.random.uniform(keys[ki], (H, H2), jnp.float32, -k1, k1); ki += 1
    fc1b = jax.random.uniform(keys[ki], (1, H2), jnp.float32, -k1, k1); ki += 1
    k2 = 1.0 / jnp.sqrt(jnp.float32(H2))
    fc2w = jax.random.uniform(keys[ki], (H2, output_size), jnp.float32, -k2, k2); ki += 1
    fc2b = jax.random.uniform(keys[ki], (1, output_size), jnp.float32, -k2, k2); ki += 1
    params += [fc1w, fc1b, fc2w, fc2b]
    return params


def pack_params(torch_params, num_layers, hidden_size, output_size, input_size=1):
    """Pack all parameters into two contiguous slabs (2 startup DMAs):
       - bf16 weight slab (rows, 4H): w_hh0 | (w_ih_l, w_hh_l) for l>=1 | fc1w | fc2w
         (narrow matrices lane-padded with zeros to 4H columns)
       - f32 row-vector slab (L+3, 4H): w_ih0 | b0 | b_l ... | fc1b | fc2b
    Row offsets are implied by (num_layers, H) and recomputed statically in-kernel."""
    assert input_size == 1, "forward does x.unsqueeze(2) -> input_size must be 1"
    H = hidden_size
    W = 4 * H

    def lane_pad(m):
        pad = W - m.shape[1]
        return jnp.pad(m, ((0, 0), (0, pad))) if pad else m

    w_ih0, w_hh0, b0 = torch_params[0], torch_params[1], torch_params[2]
    w_blocks = [w_hh0]
    b_rows = [lane_pad(w_ih0), lane_pad(b0)]
    for l in range(1, num_layers):
        w_ih, w_hh, b = torch_params[3 * l:3 * l + 3]
        w_blocks += [w_ih, w_hh]
        b_rows.append(lane_pad(b))
    fc1w, fc1b, fc2w, fc2b = torch_params[3 * num_layers:]
    w_blocks += [lane_pad(fc1w), lane_pad(fc2w)]
    b_rows += [lane_pad(fc1b), lane_pad(fc2b)]

    w_slab = jnp.concatenate(w_blocks, axis=0).astype(jnp.bfloat16)
    b_slab = jnp.concatenate(b_rows, axis=0).astype(jnp.float32)
    return w_slab, b_slab


def reference_forward(x, torch_params, *, hidden_size, num_layers, output_size):
    """Pure-JAX f32 reference (same math, torch-layout params) for correctness."""
    B, T = x.shape
    H = hidden_size
    layer_in = x[:, :, None]                              # (B, T, 1)
    for l in range(num_layers):
        w_ih, w_hh, b = torch_params[3 * l], torch_params[3 * l + 1], torch_params[3 * l + 2]
        h = jnp.zeros((B, H), jnp.float32)
        c = jnp.zeros((B, H), jnp.float32)
        outs = []
        for t in range(T):
            gates = layer_in[:, t, :] @ w_ih + h @ w_hh + b
            i_g = jax.nn.sigmoid(gates[:, 0:H])
            f_g = jax.nn.sigmoid(gates[:, H:2 * H])
            g_g = jnp.tanh(gates[:, 2 * H:3 * H])
            o_g = jax.nn.sigmoid(gates[:, 3 * H:4 * H])
            c = f_g * c + i_g * g_g
            h = o_g * jnp.tanh(c)
            outs.append(h)
        layer_in = jnp.stack(outs, axis=1)                # (B, T, H)
    fc1w, fc1b, fc2w, fc2b = torch_params[3 * num_layers:]
    z = jnp.maximum(layer_in[:, -1, :] @ fc1w + fc1b, 0.0)
    return z @ fc2w + fc2b


if __name__ == "__main__":
    # Small shapes consistent with the module: x is (batch, seq), input_size=1.
    B, T = 2, 8
    input_size, hidden_size, num_layers, output_size = 1, 32, 2, 1

    key = jax.random.PRNGKey(0)
    kx, kp = jax.random.split(key)
    x = jax.random.normal(kx, (B, T), jnp.float32)
    torch_params = init_params(kp, input_size, hidden_size, num_layers, output_size)
    w_slab, b_slab = pack_params(torch_params, num_layers, hidden_size,
                                 output_size, input_size)

    fwd = jax.jit(functools.partial(
        rul_lstm_forward, hidden_size=hidden_size,
        num_layers=num_layers, output_size=output_size))
    out = fwd(x, w_slab, b_slab)
    jax.block_until_ready(out)

    ref = reference_forward(x, torch_params, hidden_size=hidden_size,
                            num_layers=num_layers, output_size=output_size)
    assert out.shape == (B, output_size)
    # bf16 matmul operands (f32 accumulation / f32 state) -> loosened tolerance
    # vs. the all-f32 reference.
    assert jnp.allclose(out, ref, atol=5e-2, rtol=5e-2), (out, ref)

    print("KERNEL_OK")
</pallas_src>

<mosaic_0001>
module attributes {stable_mosaic.version = 11 : i64} {
  func.func @kernel(%arg0: memref<8x8x1xf32, #tpu.memory_space<vmem>>, %arg1: memref<144x128xbf16, #tpu.memory_space<vmem>>, %arg2: memref<5x128xf32, #tpu.memory_space<vmem>>, %arg3: memref<8x1xf32, #tpu.memory_space<vmem>>) attributes {dimension_semantics = [], scalar_prefetch = 0 : i64, scratch_operands = 0 : i64, tpu.core_type = #tpu.core_type<tc>} {
    %c0 = arith.constant 0 : index
    %c0_0 = arith.constant 0 : index
    %0 = vector.load %arg2[%c0, %c0_0] : memref<5x128xf32, #tpu.memory_space<vmem>>, vector<1x128xf32>
    %c1 = arith.constant 1 : index
    %c0_1 = arith.constant 0 : index
    %1 = vector.load %arg2[%c1, %c0_1] : memref<5x128xf32, #tpu.memory_space<vmem>>, vector<1x128xf32>
    %c0_2 = arith.constant 0 : index
    %c0_3 = arith.constant 0 : index
    %c0_4 = arith.constant 0 : index
    %2 = vector.load %arg0[%c0_2, %c0_3, %c0_4] : memref<8x8x1xf32, #tpu.memory_space<vmem>>, vector<8x8x1xf32>
    %3 = vector.shape_cast %0 : vector<1x128xf32> to vector<1x1x128xf32>
    %4 = vector.broadcast %2 : vector<8x8x1xf32> to vector<8x8x128xf32>
    %5 = vector.broadcast %3 : vector<1x1x128xf32> to vector<8x8x128xf32>
    %6 = arith.mulf %4, %5 : vector<8x8x128xf32>
    %7 = vector.shape_cast %1 : vector<1x128xf32> to vector<1x1x128xf32>
    %8 = vector.broadcast %7 : vector<1x1x128xf32> to vector<8x8x128xf32>
    %9 = arith.addf %6, %8 : vector<8x8x128xf32>
    %c0_5 = arith.constant 0 : index
    %c0_6 = arith.constant 0 : index
    %10 = vector.load %arg1[%c0_5, %c0_6] : memref<144x128xbf16, #tpu.memory_space<vmem>>, vector<32x128xbf16>
    %c32 = arith.constant 32 : index
    %c0_7 = arith.constant 0 : index
    %11 = vector.load %arg1[%c32, %c0_7] : memref<144x128xbf16, #tpu.memory_space<vmem>>, vector<32x128xbf16>
    %c64 = arith.constant 64 : index
    %c0_8 = arith.constant 0 : index
    %12 = vector.load %arg1[%c64, %c0_8] : memref<144x128xbf16, #tpu.memory_space<vmem>>, vector<32x128xbf16>
    %c2 = arith.constant 2 : index
    %c0_9 = arith.constant 0 : index
    %13 = vector.load %arg2[%c2, %c0_9] : memref<5x128xf32, #tpu.memory_space<vmem>>, vector<1x128xf32>
    %cst = arith.constant 0.000000e+00 : f32
    %14 = vector.broadcast %cst : f32 to vector<8x32xf32>
    %cst_10 = arith.constant 0.000000e+00 : f32
    %15 = vector.broadcast %cst_10 : f32 to vector<8x32xf32>
    %cst_11 = arith.constant 0.000000e+00 : f32
    %16 = vector.broadcast %cst_11 : f32 to vector<8x32xf32>
    %cst_12 = arith.constant 0.000000e+00 : f32
    %17 = vector.broadcast %cst_12 : f32 to vector<8x32xf32>
    %18 = vector.extract_strided_slice %9 {offsets = [0, 0, 0], sizes = [1, 8, 128], strides = [1, 1, 1]} : vector<8x8x128xf32> to vector<1x8x128xf32>
    %19 = vector.shape_cast %18 : vector<1x8x128xf32> to vector<8x128xf32>
    %20 = arith.truncf %14 : vector<8x32xf32> to vector<8x32xbf16>
    %cst_13 = arith.constant dense<0.000000e+00> : vector<8x128xf32>
    %21 = tpu.matmul %20, %10, %cst_13 {dimension_numbers = #tpu.dot_dimension_numbers<[1], [0], [0], [1], [0, 0, 1, 1], [], []>} : vector<8x32xbf16>, vector<32x128xbf16>, vector<8x128xf32> -> vector<8x128xf32>
    %22 = arith.addf %19, %21 : vector<8x128xf32>
    %23 = arith.negf %22 : vector<8x128xf32>
    %24 = math.exp %23 : vector<8x128xf32>
    %cst_14 = arith.constant 1.000000e+00 : f32
    %25 = vector.broadcast %cst_14 : f32 to vector<8x128xf32>
    %26 = arith.addf %25, %24 : vector<8x128xf32>
    %27 = arith.divf %25, %26 : vector<8x128xf32>
    %28 = math.tanh %22 : vector<8x128xf32>
    %29 = vector.extract_strided_slice %27 {offsets = [0, 0], sizes = [8, 32], strides = [1, 1]} : vector<8x128xf32> to vector<8x32xf32>
    %30 = vector.extract_strided_slice %27 {offsets = [0, 32], sizes = [8, 32], strides = [1, 1]} : vector<8x128xf32> to vector<8x32xf32>
    %31 = vector.extract_strided_slice %28 {offsets = [0, 64], sizes = [8, 32], strides = [1, 1]} : vector<8x128xf32> to vector<8x32xf32>
    %32 = vector.extract_strided_slice %27 {offsets = [0, 96], sizes = [8, 32], strides = [1, 1]} : vector<8x128xf32> to vector<8x32xf32>
    %33 = arith.mulf %30, %16 : vector<8x32xf32>
    %34 = arith.mulf %29, %31 : vector<8x32xf32>
    %35 = arith.addf %33, %34 : vector<8x32xf32>
    %36 = math.tanh %35 : vector<8x32xf32>
    %37 = arith.mulf %32, %36 : vector<8x32xf32>
    %38 = arith.truncf %37 : vector<8x32xf32> to vector<8x32xbf16>
    %cst_15 = arith.constant dense<0.000000e+00> : vector<8x128xf32>
    %39 = tpu.matmul %38, %11, %cst_15 {dimension_numbers = #tpu.dot_dimension_numbers<[1], [0], [0], [1], [0, 0, 1, 1], [], []>} : vector<8x32xbf16>, vector<32x128xbf16>, vector<8x128xf32> -> vector<8x128xf32>
    %40 = arith.truncf %15 : vector<8x32xf32> to vector<8x32xbf16>
    %cst_16 = arith.constant dense<0.000000e+00> : vector<8x128xf32>
    %41 = tpu.matmul %40, %12, %cst_16 {dimension_numbers = #tpu.dot_dimension_numbers<[1], [0], [0], [1], [0, 0, 1, 1], [], []>} : vector<8x32xbf16>, vector<32x128xbf16>, vector<8x128xf32> -> vector<8x128xf32>
    %42 = arith.addf %39, %41 : vector<8x128xf32>
    %43 = vector.broadcast %13 : vector<1x128xf32> to vector<8x128xf32>
    %44 = arith.addf %42, %43 : vector<8x128xf32>
    %45 = arith.negf %44 : vector<8x128xf32>
    %46 = math.exp %45 : vector<8x128xf32>
    %cst_17 = arith.constant 1.000000e+00 : f32
    %47 = vector.broadcast %cst_17 : f32 to vector<8x128xf32>
    %48 = arith.addf %47, %46 : vector<8x128xf32>
    %49 = arith.divf %47, %48 : vector<8x128xf32>
    %50 = math.tanh %44 : vector<8x128xf32>
    %51 = vector.extract_strided_slice %49 {offsets = [0, 0], sizes = [8, 32], strides = [1, 1]} : vector<8x128xf32> to vector<8x32xf32>
    %52 = vector.extract_strided_slice %49 {offsets = [0, 32], sizes = [8, 32], strides = [1, 1]} : vector<8x128xf32> to vector<8x32xf32>
    %53 = vector.extract_strided_slice %50 {offsets = [0, 64], sizes = [8, 32], strides = [1, 1]} : vector<8x128xf32> to vector<8x32xf32>
    %54 = vector.extract_strided_slice %49 {offsets = [0, 96], sizes = [8, 32], strides = [1, 1]} : vector<8x128xf32> to vector<8x32xf32>
    %55 = arith.mulf %52, %17 : vector<8x32xf32>
    %56 = arith.mulf %51, %53 : vector<8x32xf32>
    %57 = arith.addf %55, %56 : vector<8x32xf32>
    %58 = math.tanh %57 : vector<8x32xf32>
    %59 = arith.mulf %54, %58 : vector<8x32xf32>
    %60 = vector.extract_strided_slice %9 {offsets = [1, 0, 0], sizes = [1, 8, 128], strides = [1, 1, 1]} : vector<8x8x128xf32> to vector<1x8x128xf32>
    %61 = vector.shape_cast %60 : vector<1x8x128xf32> to vector<8x128xf32>
    %62 = arith.truncf %37 : vector<8x32xf32> to vector<8x32xbf16>
    %cst_18 = arith.constant dense<0.000000e+00> : vector<8x128xf32>
    %63 = tpu.matmul %62, %10, %cst_18 {dimension_numbers = #tpu.dot_dimension_numbers<[1], [0], [0], [1], [0, 0, 1, 1], [], []>} : vector<8x32xbf16>, vector<32x128xbf16>, vector<8x128xf32> -> vector<8x128xf32>
    %64 = arith.addf %61, %63 : vector<8x128xf32>
    %65 = arith.negf %64 : vector<8x128xf32>
    %66 = math.exp %65 : vector<8x128xf32>
    %cst_19 = arith.constant 1.000000e+00 : f32
    %67 = vector.broadcast %cst_19 : f32 to vector<8x128xf32>
    %68 = arith.addf %67, %66 : vector<8x128xf32>
    %69 = arith.divf %67, %68 : vector<8x128xf32>
    %70 = math.tanh %64 : vector<8x128xf32>
    %71 = vector.extract_strided_slice %69 {offsets = [0, 0], sizes = [8, 32], strides = [1, 1]} : vector<8x128xf32> to vector<8x32xf32>
    %72 = vector.extract_strided_slice %69 {offsets = [0, 32], sizes = [8, 32], strides = [1, 1]} : vector<8x128xf32> to vector<8x32xf32>
    %73 = vector.extract_strided_slice %70 {offsets = [0, 64], sizes = [8, 32], strides = [1, 1]} : vector<8x128xf32> to vector<8x32xf32>
    %74 = vector.extract_strided_slice %69 {offsets = [0, 96], sizes = [8, 32], strides = [1, 1]} : vector<8x128xf32> to vector<8x32xf32>
    %75 = arith.mulf %72, %35 : vector<8x32xf32>
    %76 = arith.mulf %71, %73 : vector<8x32xf32>
    %77 = arith.addf %75, %76 : vector<8x32xf32>
    %78 = math.tanh %77 : vector<8x32xf32>
    %79 = arith.mulf %74, %78 : vector<8x32xf32>
    %80 = arith.truncf %79 : vector<8x32xf32> to vector<8x32xbf16>
    %cst_20 = arith.constant dense<0.000000e+00> : vector<8x128xf32>
    %81 = tpu.matmul %80, %11, %cst_20 {dimension_numbers = #tpu.dot_dimension_numbers<[1], [0], [0], [1], [0, 0, 1, 1], [], []>} : vector<8x32xbf16>, vector<32x128xbf16>, vector<8x128xf32> -> vector<8x128xf32>
    %82 = arith.truncf %59 : vector<8x32xf32> to vector<8x32xbf16>
    %cst_21 = arith.constant dense<0.000000e+00> : vector<8x128xf32>
    %83 = tpu.matmul %82, %12, %cst_21 {dimension_numbers = #tpu.dot_dimension_numbers<[1], [0], [0], [1], [0, 0, 1, 1], [], []>} : vector<8x32xbf16>, vector<32x128xbf16>, vector<8x128xf32> -> vector<8x128xf32>
    %84 = arith.addf %81, %83 : vector<8x128xf32>
    %85 = vector.broadcast %13 : vector<1x128xf32> to vector<8x128xf32>
    %86 = arith.addf %84, %85 : vector<8x128xf32>
    %87 = arith.negf %86 : vector<8x128xf32>
    %88 = math.exp %87 : vector<8x128xf32>
    %cst_22 = arith.constant 1.000000e+00 : f32
    %89 = vector.broadcast %cst_22 : f32 to vector<8x128xf32>
    %90 = arith.addf %89, %88 : vector<8x128xf32>
    %91 = arith.divf %89, %90 : vector<8x128xf32>
    %92 = math.tanh %86 : vector<8x128xf32>
    %93 = vector.extract_strided_slice %91 {offsets = [0, 0], sizes = [8, 32], strides = [1, 1]} : vector<8x128xf32> to vector<8x32xf32>
    %94 = vector.extract_strided_slice %91 {offsets = [0, 32], sizes = [8, 32], strides = [1, 1]} : vector<8x128xf32> to vector<8x32xf32>
    %95 = vector.extract_strided_slice %92 {offsets = [0, 64], sizes = [8, 32], strides = [1, 1]} : vector<8x128xf32> to vector<8x32xf32>
    %96 = vector.extract_strided_slice %91 {offsets = [0, 96], sizes = [8, 32], strides = [1, 1]} : vector<8x128xf32> to vector<8x32xf32>
    %97 = arith.mulf %94, %57 : vector<8x32xf32>
    %98 = arith.mulf %93, %95 : vector<8x32xf32>
    %99 = arith.addf %97, %98 : vector<8x32xf32>
    %100 = math.tanh %99 : vector<8x32xf32>
    %101 = arith.mulf %96, %100 : vector<8x32xf32>
    %102 = vector.extract_strided_slice %9 {offsets = [2, 0, 0], sizes = [1, 8, 128], strides = [1, 1, 1]} : vector<8x8x128xf32> to vector<1x8x128xf32>
    %103 = vector.shape_cast %102 : vector<1x8x128xf32> to vector<8x128xf32>
    %104 = arith.truncf %79 : vector<8x32xf32> to vector<8x32xbf16>
    %cst_23 = arith.constant dense<0.000000e+00> : vector<8x128xf32>
    %105 = tpu.matmul %104, %10, %cst_23 {dimension_numbers = #tpu.dot_dimension_numbers<[1], [0], [0], [1], [0, 0, 1, 1], [], []>} : vector<8x32xbf16>, vector<32x128xbf16>, vector<8x128xf32> -> vector<8x128xf32>
    %106 = arith.addf %103, %105 : vector<8x128xf32>
    %107 = arith.negf %106 : vector<8x128xf32>
    %108 = math.exp %107 : vector<8x128xf32>
    %cst_24 = arith.constant 1.000000e+00 : f32
    %109 = vector.broadcast %cst_24 : f32 to vector<8x128xf32>
    %110 = arith.addf %109, %108 : vector<8x128xf32>
    %111 = arith.divf %109, %110 : vector<8x128xf32>
    %112 = math.tanh %106 : vector<8x128xf32>
    %113 = vector.extract_strided_slice %111 {offsets = [0, 0], sizes = [8, 32], strides = [1, 1]} : vector<8x128xf32> to vector<8x32xf32>
    %114 = vector.extract_strided_slice %111 {offsets = [0, 32], sizes = [8, 32], strides = [1, 1]} : vector<8x128xf32> to vector<8x32xf32>
    %115 = vector.extract_strided_slice %112 {offsets = [0, 64], sizes = [8, 32], strides = [1, 1]} : vector<8x128xf32> to vector<8x32xf32>
    %116 = vector.extract_strided_slice %111 {offsets = [0, 96], sizes = [8, 32], strides = [1, 1]} : vector<8x128xf32> to vector<8x32xf32>
    %117 = arith.mulf %114, %77 : vector<8x32xf32>
    %118 = arith.mulf %113, %115 : vector<8x32xf32>
    %119 = arith.addf %117, %118 : vector<8x32xf32>
    %120 = math.tanh %119 : vector<8x32xf32>
    %121 = arith.mulf %116, %120 : vector<8x32xf32>
    %122 = arith.truncf %121 : vector<8x32xf32> to vector<8x32xbf16>
    %cst_25 = arith.constant dense<0.000000e+00> : vector<8x128xf32>
    %123 = tpu.matmul %122, %11, %cst_25 {dimension_numbers = #tpu.dot_dimension_numbers<[1], [0], [0], [1], [0, 0, 1, 1], [], []>} : vector<8x32xbf16>, vector<32x128xbf16>, vector<8x128xf32> -> vector<8x128xf32>
    %124 = arith.truncf %101 : vector<8x32xf32> to vector<8x32xbf16>
    %cst_26 = arith.constant dense<0.000000e+00> : vector<8x128xf32>
    %125 = tpu.matmul %124, %12, %cst_26 {dimension_numbers = #tpu.dot_dimension_numbers<[1], [0], [0], [1], [0, 0, 1, 1], [], []>} : vector<8x32xbf16>, vector<32x128xbf16>, vector<8x128xf32> -> vector<8x128xf32>
    %126 = arith.addf %123, %125 : vector<8x128xf32>
    %127 = vector.broadcast %13 : vector<1x128xf32> to vector<8x128xf32>
    %128 = arith.addf %126, %127 : vector<8x128xf32>
    %129 = arith.negf %128 : vector<8x128xf32>
    %130 = math.exp %129 : vector<8x128xf32>
    %cst_27 = arith.constant 1.000000e+00 : f32
    %131 = vector.broadcast %cst_27 : f32 to vector<8x128xf32>
    %132 = arith.addf %131, %130 : vector<8x128xf32>
    %133 = arith.divf %131, %132 : vector<8x128xf32>
    %134 = math.tanh %128 : vector<8x128xf32>
    %135 = vector.extract_strided_slice %133 {offsets = [0, 0], sizes = [8, 32], strides = [1, 1]} : vector<8x128xf32> to vector<8x32xf32>
    %136 = vector.extract_strided_slice %133 {offsets = [0, 32], sizes = [8, 32], strides = [1, 1]} : vector<8x128xf32> to vector<8x32xf32>
    %137 = vector.extract_strided_slice %134 {offsets = [0, 64], sizes = [8, 32], strides = [1, 1]} : vector<8x128xf32> to vector<8x32xf32>
    %138 = vector.extract_strided_slice %133 {offsets = [0, 96], sizes = [8, 32], strides = [1, 1]} : vector<8x128xf32> to vector<8x32xf32>
    %139 = arith.mulf %136, %99 : vector<8x32xf32>
    %140 = arith.mulf %135, %137 : vector<8x32xf32>
    %141 = arith.addf %139, %140 : vector<8x32xf32>
    %142 = math.tanh %141 : vector<8x32xf32>
    %143 = arith.mulf %138, %142 : vector<8x32xf32>
    %144 = vector.extract_strided_slice %9 {offsets = [3, 0, 0], sizes = [1, 8, 128], strides = [1, 1, 1]} : vector<8x8x128xf32> to vector<1x8x128xf32>
    %145 = vector.shape_cast %144 : vector<1x8x128xf32> to vector<8x128xf32>
    %146 = arith.truncf %121 : vector<8x32xf32> to vector<8x32xbf16>
    %cst_28 = arith.constant dense<0.000000e+00> : vector<8x128xf32>
    %147 = tpu.matmul %146, %10, %cst_28 {dimension_numbers = #tpu.dot_dimension_numbers<[1], [0], [0], [1], [0, 0, 1, 1], [], []>} : vector<8x32xbf16>, vector<32x128xbf16>, vector<8x128xf32> -> vector<8x128xf32>
    %148 = arith.addf %145, %147 : vector<8x128xf32>
    %149 = arith.negf %148 : vector<8x128xf32>
    %150 = math.exp %149 : vector<8x128xf32>
    %cst_29 = arith.constant 1.000000e+00 : f32
    %151 = vector.broadcast %cst_29 : f32 to vector<8x128xf32>
    %152 = arith.addf %151, %150 : vector<8x128xf32>
    %153 = arith.divf %151, %152 : vector<8x128xf32>
    %154 = math.tanh %148 : vector<8x128xf32>
    %155 = vector.extract_strided_slice %153 {offsets = [0, 0], sizes = [8, 32], strides = [1, 1]} : vector<8x128xf32> to vector<8x32xf32>
    %156 = vector.extract_strided_slice %153 {offsets = [0, 32], sizes = [8, 32], strides = [1, 1]} : vector<8x128xf32> to vector<8x32xf32>
    %157 = vector.extract_strided_slice %154 {offsets = [0, 64], sizes = [8, 32], strides = [1, 1]} : vector<8x128xf32> to vector<8x32xf32>
    %158 = vector.extract_strided_slice %153 {offsets = [0, 96], sizes = [8, 32], strides = [1, 1]} : vector<8x128xf32> to vector<8x32xf32>
    %159 = arith.mulf %156, %119 : vector<8x32xf32>
    %160 = arith.mulf %155, %157 : vector<8x32xf32>
    %161 = arith.addf %159, %160 : vector<8x32xf32>
    %162 = math.tanh %161 : vector<8x32xf32>
    %163 = arith.mulf %158, %162 : vector<8x32xf32>
    %164 = arith.truncf %163 : vector<8x32xf32> to vector<8x32xbf16>
    %cst_30 = arith.constant dense<0.000000e+00> : vector<8x128xf32>
    %165 = tpu.matmul %164, %11, %cst_30 {dimension_numbers = #tpu.dot_dimension_numbers<[1], [0], [0], [1], [0, 0, 1, 1], [], []>} : vector<8x32xbf16>, vector<32x128xbf16>, vector<8x128xf32> -> vector<8x128xf32>
    %166 = arith.truncf %143 : vector<8x32xf32> to vector<8x32xbf16>
    %cst_31 = arith.constant dense<0.000000e+00> : vector<8x128xf32>
    %167 = tpu.matmul %166, %12, %cst_31 {dimension_numbers = #tpu.dot_dimension_numbers<[1], [0], [0], [1], [0, 0, 1, 1], [], []>} : vector<8x32xbf16>, vector<32x128xbf16>, vector<8x128xf32> -> vector<8x128xf32>
    %168 = arith.addf %165, %167 : vector<8x128xf32>
    %169 = vector.broadcast %13 : vector<1x128xf32> to vector<8x128xf32>
    %170 = arith.addf %168, %169 : vector<8x128xf32>
    %171 = arith.negf %170 : vector<8x128xf32>
    %172 = math.exp %171 : vector<8x128xf32>
    %cst_32 = arith.constant 1.000000e+00 : f32
    %173 = vector.broadcast %cst_32 : f32 to vector<8x128xf32>
    %174 = arith.addf %173, %172 : vector<8x128xf32>
    %175 = arith.divf %173, %174 : vector<8x128xf32>
    %176 = math.tanh %170 : vector<8x128xf32>
    %177 = vector.extract_strided_slice %175 {offsets = [0, 0], sizes = [8, 32], strides = [1, 1]} : vector<8x128xf32> to vector<8x32xf32>
    %178 = vector.extract_strided_slice %175 {offsets = [0, 32], sizes = [8, 32], strides = [1, 1]} : vector<8x128xf32> to vector<8x32xf32>
    %179 = vector.extract_strided_slice %176 {offsets = [0, 64], sizes = [8, 32], strides = [1, 1]} : vector<8x128xf32> to vector<8x32xf32>
    %180 = vector.extract_strided_slice %175 {offsets = [0, 96], sizes = [8, 32], strides = [1, 1]} : vector<8x128xf32> to vector<8x32xf32>
    %181 = arith.mulf %178, %141 : vector<8x32xf32>
    %182 = arith.mulf %177, %179 : vector<8x32xf32>
    %183 = arith.addf %181, %182 : vector<8x32xf32>
    %184 = math.tanh %183 : vector<8x32xf32>
    %185 = arith.mulf %180, %184 : vector<8x32xf32>
    %186 = vector.extract_strided_slice %9 {offsets = [4, 0, 0], sizes = [1, 8, 128], strides = [1, 1, 1]} : vector<8x8x128xf32> to vector<1x8x128xf32>
    %187 = vector.shape_cast %186 : vector<1x8x128xf32> to vector<8x128xf32>
    %188 = arith.truncf %163 : vector<8x32xf32> to vector<8x32xbf16>
    %cst_33 = arith.constant dense<0.000000e+00> : vector<8x128xf32>
    %189 = tpu.matmul %188, %10, %cst_33 {dimension_numbers = #tpu.dot_dimension_numbers<[1], [0], [0], [1], [0, 0, 1, 1], [], []>} : vector<8x32xbf16>, vector<32x128xbf16>, vector<8x128xf32> -> vector<8x128xf32>
    %190 = arith.addf %187, %189 : vector<8x128xf32>
    %191 = arith.negf %190 : vector<8x128xf32>
    %192 = math.exp %191 : vector<8x128xf32>
    %cst_34 = arith.constant 1.000000e+00 : f32
    %193 = vector.broadcast %cst_34 : f32 to vector<8x128xf32>
    %194 = arith.addf %193, %192 : vector<8x128xf32>
    %195 = arith.divf %193, %194 : vector<8x128xf32>
    %196 = math.tanh %190 : vector<8x128xf32>
    %197 = vector.extract_strided_slice %195 {offsets = [0, 0], sizes = [8, 32], strides = [1, 1]} : vector<8x128xf32> to vector<8x32xf32>
    %198 = vector.extract_strided_slice %195 {offsets = [0, 32], sizes = [8, 32], strides = [1, 1]} : vector<8x128xf32> to vector<8x32xf32>
    %199 = vector.extract_strided_slice %196 {offsets = [0, 64], sizes = [8, 32], strides = [1, 1]} : vector<8x128xf32> to vector<8x32xf32>
    %200 = vector.extract_strided_slice %195 {offsets = [0, 96], sizes = [8, 32], strides = [1, 1]} : vector<8x128xf32> to vector<8x32xf32>
    %201 = arith.mulf %198, %161 : vector<8x32xf32>
    %202 = arith.mulf %197, %199 : vector<8x32xf32>
    %203 = arith.addf %201, %202 : vector<8x32xf32>
    %204 = math.tanh %203 : vector<8x32xf32>
    %205 = arith.mulf %200, %204 : vector<8x32xf32>
    %206 = arith.truncf %205 : vector<8x32xf32> to vector<8x32xbf16>
    %cst_35 = arith.constant dense<0.000000e+00> : vector<8x128xf32>
    %207 = tpu.matmul %206, %11, %cst_35 {dimension_numbers = #tpu.dot_dimension_numbers<[1], [0], [0], [1], [0, 0, 1, 1], [], []>} : vector<8x32xbf16>, vector<32x128xbf16>, vector<8x128xf32> -> vector<8x128xf32>
    %208 = arith.truncf %185 : vector<8x32xf32> to vector<8x32xbf16>
    %cst_36 = arith.constant dense<0.000000e+00> : vector<8x128xf32>
    %209 = tpu.matmul %208, %12, %cst_36 {dimension_numbers = #tpu.dot_dimension_numbers<[1], [0], [0], [1], [0, 0, 1, 1], [], []>} : vector<8x32xbf16>, vector<32x128xbf16>, vector<8x128xf32> -> vector<8x128xf32>
    %210 = arith.addf %207, %209 : vector<8x128xf32>
    %211 = vector.broadcast %13 : vector<1x128xf32> to vector<8x128xf32>
    %212 = arith.addf %210, %211 : vector<8x128xf32>
    %213 = arith.negf %212 : vector<8x128xf32>
    %214 = math.exp %213 : vector<8x128xf32>
    %cst_37 = arith.constant 1.000000e+00 : f32
    %215 = vector.broadcast %cst_37 : f32 to vector<8x128xf32>
    %216 = arith.addf %215, %214 : vector<8x128xf32>
    %217 = arith.divf %215, %216 : vector<8x128xf32>
    %218 = math.tanh %212 : vector<8x128xf32>
    %219 = vector.extract_strided_slice %217 {offsets = [0, 0], sizes = [8, 32], strides = [1, 1]} : vector<8x128xf32> to vector<8x32xf32>
    %220 = vector.extract_strided_slice %217 {offsets = [0, 32], sizes = [8, 32], strides = [1, 1]} : vector<8x128xf32> to vector<8x32xf32>
    %221 = vector.extract_strided_slice %218 {offsets = [0, 64], sizes = [8, 32], strides = [1, 1]} : vector<8x128xf32> to vector<8x32xf32>
    %222 = vector.extract_strided_slice %217 {offsets = [0, 96], sizes = [8, 32], strides = [1, 1]} : vector<8x128xf32> to vector<8x32xf32>
    %223 = arith.mulf %220, %183 : vector<8x32xf32>
    %224 = arith.mulf %219, %221 : vector<8x32xf32>
    %225 = arith.addf %223, %224 : vector<8x32xf32>
    %226 = math.tanh %225 : vector<8x32xf32>
    %227 = arith.mulf %222, %226 : vector<8x32xf32>
    %228 = vector.extract_strided_slice %9 {offsets = [5, 0, 0], sizes = [1, 8, 128], strides = [1, 1, 1]} : vector<8x8x128xf32> to vector<1x8x128xf32>
    %229 = vector.shape_cast %228 : vector<1x8x128xf32> to vector<8x128xf32>
    %230 = arith.truncf %205 : vector<8x32xf32> to vector<8x32xbf16>
    %cst_38 = arith.constant dense<0.000000e+00> : vector<8x128xf32>
    %231 = tpu.matmul %230, %10, %cst_38 {dimension_numbers = #tpu.dot_dimension_numbers<[1], [0], [0], [1], [0, 0, 1, 1], [], []>} : vector<8x32xbf16>, vector<32x128xbf16>, vector<8x128xf32> -> vector<8x128xf32>
    %232 = arith.addf %229, %231 : vector<8x128xf32>
    %233 = arith.negf %232 : vector<8x128xf32>
    %234 = math.exp %233 : vector<8x128xf32>
    %cst_39 = arith.constant 1.000000e+00 : f32
    %235 = vector.broadcast %cst_39 : f32 to vector<8x128xf32>
    %236 = arith.addf %235, %234 : vector<8x128xf32>
    %237 = arith.divf %235, %236 : vector<8x128xf32>
    %238 = math.tanh %232 : vector<8x128xf32>
    %239 = vector.extract_strided_slice %237 {offsets = [0, 0], sizes = [8, 32], strides = [1, 1]} : vector<8x128xf32> to vector<8x32xf32>
    %240 = vector.extract_strided_slice %237 {offsets = [0, 32], sizes = [8, 32], strides = [1, 1]} : vector<8x128xf32> to vector<8x32xf32>
    %241 = vector.extract_strided_slice %238 {offsets = [0, 64], sizes = [8, 32], strides = [1, 1]} : vector<8x128xf32> to vector<8x32xf32>
    %242 = vector.extract_strided_slice %237 {offsets = [0, 96], sizes = [8, 32], strides = [1, 1]} : vector<8x128xf32> to vector<8x32xf32>
    %243 = arith.mulf %240, %203 : vector<8x32xf32>
    %244 = arith.mulf %239, %241 : vector<8x32xf32>
    %245 = arith.addf %243, %244 : vector<8x32xf32>
    %246 = math.tanh %245 : vector<8x32xf32>
    %247 = arith.mulf %242, %246 : vector<8x32xf32>
    %248 = arith.truncf %247 : vector<8x32xf32> to vector<8x32xbf16>
    %cst_40 = arith.constant dense<0.000000e+00> : vector<8x128xf32>
    %249 = tpu.matmul %248, %11, %cst_40 {dimension_numbers = #tpu.dot_dimension_numbers<[1], [0], [0], [1], [0, 0, 1, 1], [], []>} : vector<8x32xbf16>, vector<32x128xbf16>, vector<8x128xf32> -> vector<8x128xf32>
    %250 = arith.truncf %227 : vector<8x32xf32> to vector<8x32xbf16>
    %cst_41 = arith.constant dense<0.000000e+00> : vector<8x128xf32>
    %251 = tpu.matmul %250, %12, %cst_41 {dimension_numbers = #tpu.dot_dimension_numbers<[1], [0], [0], [1], [0, 0, 1, 1], [], []>} : vector<8x32xbf16>, vector<32x128xbf16>, vector<8x128xf32> -> vector<8x128xf32>
    %252 = arith.addf %249, %251 : vector<8x128xf32>
    %253 = vector.broadcast %13 : vector<1x128xf32> to vector<8x128xf32>
    %254 = arith.addf %252, %253 : vector<8x128xf32>
    %255 = arith.negf %254 : vector<8x128xf32>
    %256 = math.exp %255 : vector<8x128xf32>
    %cst_42 = arith.constant 1.000000e+00 : f32
    %257 = vector.broadcast %cst_42 : f32 to vector<8x128xf32>
    %258 = arith.addf %257, %256 : vector<8x128xf32>
    %259 = arith.divf %257, %258 : vector<8x128xf32>
    %260 = math.tanh %254 : vector<8x128xf32>
    %261 = vector.extract_strided_slice %259 {offsets = [0, 0], sizes = [8, 32], strides = [1, 1]} : vector<8x128xf32> to vector<8x32xf32>
    %262 = vector.extract_strided_slice %259 {offsets = [0, 32], sizes = [8, 32], strides = [1, 1]} : vector<8x128xf32> to vector<8x32xf32>
    %263 = vector.extract_strided_slice %260 {offsets = [0, 64], sizes = [8, 32], strides = [1, 1]} : vector<8x128xf32> to vector<8x32xf32>
    %264 = vector.extract_strided_slice %259 {offsets = [0, 96], sizes = [8, 32], strides = [1, 1]} : vector<8x128xf32> to vector<8x32xf32>
    %265 = arith.mulf %262, %225 : vector<8x32xf32>
    %266 = arith.mulf %261, %263 : vector<8x32xf32>
    %267 = arith.addf %265, %266 : vector<8x32xf32>
    %268 = math.tanh %267 : vector<8x32xf32>
    %269 = arith.mulf %264, %268 : vector<8x32xf32>
    %270 = vector.extract_strided_slice %9 {offsets = [6, 0, 0], sizes = [1, 8, 128], strides = [1, 1, 1]} : vector<8x8x128xf32> to vector<1x8x128xf32>
    %271 = vector.shape_cast %270 : vector<1x8x128xf32> to vector<8x128xf32>
    %272 = arith.truncf %247 : vector<8x32xf32> to vector<8x32xbf16>
    %cst_43 = arith.constant dense<0.000000e+00> : vector<8x128xf32>
    %273 = tpu.matmul %272, %10, %cst_43 {dimension_numbers = #tpu.dot_dimension_numbers<[1], [0], [0], [1], [0, 0, 1, 1], [], []>} : vector<8x32xbf16>, vector<32x128xbf16>, vector<8x128xf32> -> vector<8x128xf32>
    %274 = arith.addf %271, %273 : vector<8x128xf32>
    %275 = arith.negf %274 : vector<8x128xf32>
    %276 = math.exp %275 : vector<8x128xf32>
    %cst_44 = arith.constant 1.000000e+00 : f32
    %277 = vector.broadcast %cst_44 : f32 to vector<8x128xf32>
    %278 = arith.addf %277, %276 : vector<8x128xf32>
    %279 = arith.divf %277, %278 : vector<8x128xf32>
    %280 = math.tanh %274 : vector<8x128xf32>
    %281 = vector.extract_strided_slice %279 {offsets = [0, 0], sizes = [8, 32], strides = [1, 1]} : vector<8x128xf32> to vector<8x32xf32>
    %282 = vector.extract_strided_slice %279 {offsets = [0, 32], sizes = [8, 32], strides = [1, 1]} : vector<8x128xf32> to vector<8x32xf32>
    %283 = vector.extract_strided_slice %280 {offsets = [0, 64], sizes = [8, 32], strides = [1, 1]} : vector<8x128xf32> to vector<8x32xf32>
    %284 = vector.extract_strided_slice %279 {offsets = [0, 96], sizes = [8, 32], strides = [1, 1]} : vector<8x128xf32> to vector<8x32xf32>
    %285 = arith.mulf %282, %245 : vector<8x32xf32>
    %286 = arith.mulf %281, %283 : vector<8x32xf32>
    %287 = arith.addf %285, %286 : vector<8x32xf32>
    %288 = math.tanh %287 : vector<8x32xf32>
    %289 = arith.mulf %284, %288 : vector<8x32xf32>
    %290 = arith.truncf %289 : vector<8x32xf32> to vector<8x32xbf16>
    %cst_45 = arith.constant dense<0.000000e+00> : vector<8x128xf32>
    %291 = tpu.matmul %290, %11, %cst_45 {dimension_numbers = #tpu.dot_dimension_numbers<[1], [0], [0], [1], [0, 0, 1, 1], [], []>} : vector<8x32xbf16>, vector<32x128xbf16>, vector<8x128xf32> -> vector<8x128xf32>
    %292 = arith.truncf %269 : vector<8x32xf32> to vector<8x32xbf16>
    %cst_46 = arith.constant dense<0.000000e+00> : vector<8x128xf32>
    %293 = tpu.matmul %292, %12, %cst_46 {dimension_numbers = #tpu.dot_dimension_numbers<[1], [0], [0], [1], [0, 0, 1, 1], [], []>} : vector<8x32xbf16>, vector<32x128xbf16>, vector<8x128xf32> -> vector<8x128xf32>
    %294 = arith.addf %291, %293 : vector<8x128xf32>
    %295 = vector.broadcast %13 : vector<1x128xf32> to vector<8x128xf32>
    %296 = arith.addf %294, %295 : vector<8x128xf32>
    %297 = arith.negf %296 : vector<8x128xf32>
    %298 = math.exp %297 : vector<8x128xf32>
    %cst_47 = arith.constant 1.000000e+00 : f32
    %299 = vector.broadcast %cst_47 : f32 to vector<8x128xf32>
    %300 = arith.addf %299, %298 : vector<8x128xf32>
    %301 = arith.divf %299, %300 : vector<8x128xf32>
    %302 = math.tanh %296 : vector<8x128xf32>
    %303 = vector.extract_strided_slice %301 {offsets = [0, 0], sizes = [8, 32], strides = [1, 1]} : vector<8x128xf32> to vector<8x32xf32>
    %304 = vector.extract_strided_slice %301 {offsets = [0, 32], sizes = [8, 32], strides = [1, 1]} : vector<8x128xf32> to vector<8x32xf32>
    %305 = vector.extract_strided_slice %302 {offsets = [0, 64], sizes = [8, 32], strides = [1, 1]} : vector<8x128xf32> to vector<8x32xf32>
    %306 = vector.extract_strided_slice %301 {offsets = [0, 96], sizes = [8, 32], strides = [1, 1]} : vector<8x128xf32> to vector<8x32xf32>
    %307 = arith.mulf %304, %267 : vector<8x32xf32>
    %308 = arith.mulf %303, %305 : vector<8x32xf32>
    %309 = arith.addf %307, %308 : vector<8x32xf32>
    %310 = math.tanh %309 : vector<8x32xf32>
    %311 = arith.mulf %306, %310 : vector<8x32xf32>
    %312 = vector.extract_strided_slice %9 {offsets = [7, 0, 0], sizes = [1, 8, 128], strides = [1, 1, 1]} : vector<8x8x128xf32> to vector<1x8x128xf32>
    %313 = vector.shape_cast %312 : vector<1x8x128xf32> to vector<8x128xf32>
    %314 = arith.truncf %289 : vector<8x32xf32> to vector<8x32xbf16>
    %cst_48 = arith.constant dense<0.000000e+00> : vector<8x128xf32>
    %315 = tpu.matmul %314, %10, %cst_48 {dimension_numbers = #tpu.dot_dimension_numbers<[1], [0], [0], [1], [0, 0, 1, 1], [], []>} : vector<8x32xbf16>, vector<32x128xbf16>, vector<8x128xf32> -> vector<8x128xf32>
    %316 = arith.addf %313, %315 : vector<8x128xf32>
    %317 = arith.negf %316 : vector<8x128xf32>
    %318 = math.exp %317 : vector<8x128xf32>
    %cst_49 = arith.constant 1.000000e+00 : f32
    %319 = vector.broadcast %cst_49 : f32 to vector<8x128xf32>
    %320 = arith.addf %319, %318 : vector<8x128xf32>
    %321 = arith.divf %319, %320 : vector<8x128xf32>
    %322 = math.tanh %316 : vector<8x128xf32>
    %323 = vector.extract_strided_slice %321 {offsets = [0, 0], sizes = [8, 32], strides = [1, 1]} : vector<8x128xf32> to vector<8x32xf32>
    %324 = vector.extract_strided_slice %321 {offsets = [0, 32], sizes = [8, 32], strides = [1, 1]} : vector<8x128xf32> to vector<8x32xf32>
    %325 = vector.extract_strided_slice %322 {offsets = [0, 64], sizes = [8, 32], strides = [1, 1]} : vector<8x128xf32> to vector<8x32xf32>
    %326 = vector.extract_strided_slice %321 {offsets = [0, 96], sizes = [8, 32], strides = [1, 1]} : vector<8x128xf32> to vector<8x32xf32>
    %327 = arith.mulf %324, %287 : vector<8x32xf32>
    %328 = arith.mulf %323, %325 : vector<8x32xf32>
    %329 = arith.addf %327, %328 : vector<8x32xf32>
    %330 = math.tanh %329 : vector<8x32xf32>
    %331 = arith.mulf %326, %330 : vector<8x32xf32>
    %332 = arith.truncf %331 : vector<8x32xf32> to vector<8x32xbf16>
    %cst_50 = arith.constant dense<0.000000e+00> : vector<8x128xf32>
    %333 = tpu.matmul %332, %11, %cst_50 {dimension_numbers = #tpu.dot_dimension_numbers<[1], [0], [0], [1], [0, 0, 1, 1], [], []>} : vector<8x32xbf16>, vector<32x128xbf16>, vector<8x128xf32> -> vector<8x128xf32>
    %334 = arith.truncf %311 : vector<8x32xf32> to vector<8x32xbf16>
    %cst_51 = arith.constant dense<0.000000e+00> : vector<8x128xf32>
    %335 = tpu.matmul %334, %12, %cst_51 {dimension_numbers = #tpu.dot_dimension_numbers<[1], [0], [0], [1], [0, 0, 1, 1], [], []>} : vector<8x32xbf16>, vector<32x128xbf16>, vector<8x128xf32> -> vector<8x128xf32>
    %336 = arith.addf %333, %335 : vector<8x128xf32>
    %337 = vector.broadcast %13 : vector<1x128xf32> to vector<8x128xf32>
    %338 = arith.addf %336, %337 : vector<8x128xf32>
    %339 = arith.negf %338 : vector<8x128xf32>
    %340 = math.exp %339 : vector<8x128xf32>
    %cst_52 = arith.constant 1.000000e+00 : f32
    %341 = vector.broadcast %cst_52 : f32 to vector<8x128xf32>
    %342 = arith.addf %341, %340 : vector<8x128xf32>
    %343 = arith.divf %341, %342 : vector<8x128xf32>
    %344 = math.tanh %338 : vector<8x128xf32>
    %345 = vector.extract_strided_slice %343 {offsets = [0, 0], sizes = [8, 32], strides = [1, 1]} : vector<8x128xf32> to vector<8x32xf32>
    %346 = vector.extract_strided_slice %343 {offsets = [0, 32], sizes = [8, 32], strides = [1, 1]} : vector<8x128xf32> to vector<8x32xf32>
    %347 = vector.extract_strided_slice %344 {offsets = [0, 64], sizes = [8, 32], strides = [1, 1]} : vector<8x128xf32> to vector<8x32xf32>
    %348 = vector.extract_strided_slice %343 {offsets = [0, 96], sizes = [8, 32], strides = [1, 1]} : vector<8x128xf32> to vector<8x32xf32>
    %349 = arith.mulf %346, %309 : vector<8x32xf32>
    %350 = arith.mulf %345, %347 : vector<8x32xf32>
    %351 = arith.addf %349, %350 : vector<8x32xf32>
    %352 = math.tanh %351 : vector<8x32xf32>
    %353 = arith.mulf %348, %352 : vector<8x32xf32>
    %c96 = arith.constant 96 : index
    %c0_53 = arith.constant 0 : index
    %354 = vector.load %arg1[%c96, %c0_53] : memref<144x128xbf16, #tpu.memory_space<vmem>>, vector<32x16xbf16>
    %c3 = arith.constant 3 : index
    %c0_54 = arith.constant 0 : index
    %355 = vector.load %arg2[%c3, %c0_54] : memref<5x128xf32, #tpu.memory_space<vmem>>, vector<1x16xf32>
    %c128 = arith.constant 128 : index
    %c0_55 = arith.constant 0 : index
    %356 = vector.load %arg1[%c128, %c0_55] : memref<144x128xbf16, #tpu.memory_space<vmem>>, vector<16x1xbf16>
    %c4 = arith.constant 4 : index
    %c0_56 = arith.constant 0 : index
    %357 = vector.load %arg2[%c4, %c0_56] : memref<5x128xf32, #tpu.memory_space<vmem>>, vector<1x1xf32>
    %358 = arith.truncf %353 : vector<8x32xf32> to vector<8x32xbf16>
    %cst_57 = arith.constant dense<0.000000e+00> : vector<8x16xf32>
    %359 = tpu.matmul %358, %354, %cst_57 {dimension_numbers = #tpu.dot_dimension_numbers<[1], [0], [0], [1], [0, 0, 1, 1], [], []>} : vector<8x32xbf16>, vector<32x16xbf16>, vector<8x16xf32> -> vector<8x16xf32>
    %360 = vector.broadcast %355 : vector<1x16xf32> to vector<8x16xf32>
    %361 = arith.addf %359, %360 : vector<8x16xf32>
    %cst_58 = arith.constant 0.000000e+00 : f32
    %362 = vector.broadcast %cst_58 : f32 to vector<8x16xf32>
    %363 = arith.maximumf %361, %362 : vector<8x16xf32>
    %364 = arith.truncf %363 : vector<8x16xf32> to vector<8x16xbf16>
    %cst_59 = arith.constant dense<0.000000e+00> : vector<8x1xf32>
    %365 = tpu.matmul %364, %356, %cst_59 {dimension_numbers = #tpu.dot_dimension_numbers<[1], [0], [0], [1], [0, 0, 1, 1], [], []>} : vector<8x16xbf16>, vector<16x1xbf16>, vector<8x1xf32> -> vector<8x1xf32>
    %366 = vector.broadcast %357 : vector<1x1xf32> to vector<8x1xf32>
    %367 = arith.addf %365, %366 : vector<8x1xf32>
    %c0_60 = arith.constant 0 : index
    %c0_61 = arith.constant 0 : index
    %368 = vector.load %arg3[%c0_60, %c0_61] : memref<8x1xf32, #tpu.memory_space<vmem>>, vector<8x1xf32>
    tpu.vector_store %arg3[%c0_60, %c0_61], %367 {strides = array<i32>} : memref<8x1xf32, #tpu.memory_space<vmem>>, vector<8x1xf32>,
    return
  }
}

</mosaic_0001>

<llo_original>
// kernel: rul_lstm_forward.1
$region0: #{rul_lstm_forward.1}
  #allocation0 [shape = 'u32[]', space=smem, size = 0x4, offset = 0x4, fixed_abs, tag = 'smem constant byte address 0x4 - core index']
  #allocation1 [shape = 'u32[72,128]{1,0:T(1,128)}', space=vmem, size = 0x9000, scoped, tag = 'internal scratch']
  %s0 = inlined_call_operand.vmem [shape: f32[8,8,1], index: 0, kind: input, shape index: {}]
  %s1 = inlined_call_operand.vmem [shape: bf16[144,128], index: 1, kind: input, shape index: {}]
  %s2 = inlined_call_operand.vmem [shape: f32[5,128], index: 2, kind: input, shape index: {}]
  %s3 = inlined_call_operand.vmem [shape: f32[8,1], index: 3, kind: output, shape index: {}]
  %s4 = sld [smem:[#allocation0]]
  $region22: #{rul_lstm_forward.1} parent=0
    _
  %s6 = ssub.s32 1, %s4
  %s7 = scalar_select 0, %s6, %s4
  // Predicated region
  $region2: #{rul_lstm_forward.1} parent=0 // pred_check
    _
  $region3: #{rul_lstm_forward.1} parent=0 // pred_check_branch
    %9 = sbr.rel (0) target = $region5
  $region4: #{rul_lstm_forward.1} parent=0 // pred_region
    _
  $region5: #{rul_lstm_forward.1} parent=0 // pred_fallthru
    _
  // Predicated region
  $region6: #{rul_lstm_forward.1} parent=0 // pred_check
    _
  $region7: #{rul_lstm_forward.1} parent=0 // pred_check_branch
    %11 = sbr.rel (0) target = $region9
  $region8: #{rul_lstm_forward.1} parent=0 // pred_region
    _
  $region9: #{rul_lstm_forward.1} parent=0 // pred_fallthru
    _
  // Predicated region
  $region10: #{rul_lstm_forward.1} parent=0 // pred_check
    _
  $region11: #{rul_lstm_forward.1} parent=0 // pred_check_branch
    %13 = sbr.rel (0) target = $region13
  $region12: #{rul_lstm_forward.1} parent=0 // pred_region
    _
  $region13: #{rul_lstm_forward.1} parent=0 // pred_fallthru
    _
  %v15 = vld [vmem:[%s2] sm:$0x1]
  %v16 = vld [vmem:[%s2 + $0x1] sm:$0x1]
  %v17 = vld [vmem:[%s0] sm:$0xff]
  %v18 = vld [vmem:[%s0 + $0x8] sm:$0xff]
  %v19 = vld [vmem:[%s0 + $0x10] sm:$0xff]
  %v20 = vld [vmem:[%s0 + $0x18] sm:$0xff]
  %v21 = vld [vmem:[%s0 + $0x20] sm:$0xff]
  %v22 = vld [vmem:[%s0 + $0x28] sm:$0xff]
  %v23 = vld [vmem:[%s0 + $0x30] sm:$0xff]
  %v24 = vld [vmem:[%s0 + $0x38] sm:$0xff]
  %26 = vset.pattern.permute.xlu0 0
  %27 = vperm.xlu0 %26, %v17
  %v28 = vpop.permute.xlu0 %27
  %31 = vset.pattern.permute.xlu0 0
  %32 = vperm.xlu0 %31, %v18
  %v33 = vpop.permute.xlu0 %32
  %36 = vset.pattern.permute.xlu0 0
  %37 = vperm.xlu0 %36, %v19
  %v38 = vpop.permute.xlu0 %37
  %41 = vset.pattern.permute.xlu0 0
  %42 = vperm.xlu0 %41, %v20
  %v43 = vpop.permute.xlu0 %42
  %46 = vset.pattern.permute.xlu0 0
  %47 = vperm.xlu0 %46, %v21
  %v48 = vpop.permute.xlu0 %47
  %51 = vset.pattern.permute.xlu0 0
  %52 = vperm.xlu0 %51, %v22
  %v53 = vpop.permute.xlu0 %52
  %56 = vset.pattern.permute.xlu0 0
  %57 = vperm.xlu0 %56, %v23
  %v58 = vpop.permute.xlu0 %57
  %61 = vset.pattern.permute.xlu0 0
  %62 = vperm.xlu0 %61, %v24
  %v63 = vpop.permute.xlu0 %62
  %v65 = vperm.slane %v15, 0
  %v66 = vmul.f32 %v28, %v65
  %v67 = vmul.f32 %v33, %v65
  %v68 = vmul.f32 %v38, %v65
  %v69 = vmul.f32 %v43, %v65
  %v70 = vmul.f32 %v48, %v65
  %v71 = vmul.f32 %v53, %v65
  %v72 = vmul.f32 %v58, %v65
  %v73 = vmul.f32 %v63, %v65
  %v74 = vperm.slane %v16, 0
  %v75 = vadd.f32 %v66, %v74
  %v76 = vadd.f32 %v67, %v74
  %v77 = vadd.f32 %v68, %v74
  %v78 = vadd.f32 %v69, %v74
  %v79 = vadd.f32 %v70, %v74
  %v80 = vadd.f32 %v71, %v74
  %v81 = vadd.f32 %v72, %v74
  %v82 = vadd.f32 %v73, %v74
  %v83 = vld [vmem:[%s1] sm:$0xf]
  %v84 = vld [vmem:[%s1 + $0x4] sm:$0xf]
  %v85 = vld [vmem:[%s1 + $0x8] sm:$0xf]
  %v86 = vld [vmem:[%s1 + $0xc] sm:$0xf]
  %v87 = vld [vmem:[%s1 + $0x10] sm:$0xf]
  %v88 = vld [vmem:[%s1 + $0x14] sm:$0xf]
  %v89 = vld [vmem:[%s1 + $0x18] sm:$0xf]
  %v90 = vld [vmem:[%s1 + $0x1c] sm:$0xf]
  %v91 = vld [vmem:[%s1 + $0x20] sm:$0xf]
  %v92 = vld [vmem:[%s1 + $0x24] sm:$0xf]
  %v93 = vld [vmem:[%s1 + $0x28] sm:$0xf]
  %v94 = vld [vmem:[%s1 + $0x2c] sm:$0xf]
  %v95 = vld [vmem:[%s2 + $0x2] sm:$0x1]
  %v100 = vunpack.c.l.b16 %v83
  %v101 = vunpack.c.l.b16 %v84
  %v102 = vunpack.c.l.b16 %v85
  %v103 = vunpack.c.l.b16 %v86
  %v104 = vpack.c.b16 %v101, %v100
  %v105 = vpack.c.b16 %v103, %v102
  %vm108 = vcmask 261120
  %v110 = vsel %vm108, 0, 0
  %112 = vmatpush.bf16.msra.mxu0 0
  %113 = vmatpush.bf16.msra.mxu0 0
  %114 = vmatpush.bf16.msra.mxu0 0
  %115 = vmatpush.bf16.msra.mxu0 0
  %116 = vmatpush.bf16.msra.mxu0 0
  %117 = vmatpush.bf16.msra.mxu0 0
  %118 = vmatpush.bf16.msra.mxu0 %v105
  %119 = vmatpush.bf16.msra.mxu0 %v104
  %120 = vmatmul.bf16.gmra.mxu0 %v110
  %v121 = vpop.f32.mrf.mxu0
  %v122 = vadd.f32 0.0, %v121
  %v123 = vpop.f32.mrf.mxu0
  %124 = vdwg.mxu0
  %v125 = vadd.f32 %v75, %v122
  %v126 = vxor.u32 %v125, 2147483648
  %v127 = vmul.f32 %v126, 1.442695
  %v128 = vpow.pop %v127
  %v129 = vadd.f32 %v128, 1.0
  %v130 = vrcp.pop %v129
  %v131 = vmul.f32 %v129, %v130
  %v132 = vsub.f32 1.0, %v131
  %v133 = vmul.f32 %v130, %v132
  %v134 = vadd.f32 %v130, %v133
  %vm135 = vweird.f32 %v129
  %vm136 = vweird.f32 %v130
  %vm137 = vmor %vm135, %vm136
  %v138 = vsel %vm137, %v130, %v134
  %v139 = vand.u32 2147483647, %v129
  %vm140 = vcmp.eq.f32.partialorder %v139, 8.507059e+37
  %v141 = vand.u32 %v129, 2147483648
  %v142 = vor.u32 1.1754944e-38, %v141
  %v143 = vsel %vm140, %v142, %v138
  %v144 = vmul.f32 1.0, %v143
  %v145 = vtanh.pop %v125
  %v146 = vmul.f32 %v144, 0.0
  %148 = vrot.lane.b32.xlu0 %v145, 64
  %v149 = vpop.permute.xlu0 %148
  %v151 = vmul.f32 %v144, %v149
  %153 = vrot.lane.b32.xlu0 %v151, 32
  %v154 = vpop.permute.xlu0 %153
  %v156 = vadd.f32 %v146, %v154
  %v157 = vtanh.pop %v156
  %159 = vrot.lane.b32.xlu0 %v157, 64
  %v160 = vpop.permute.xlu0 %159
  %v162 = vmul.f32 %v144, %v160
  %v163 = vpack.c.bf16 %v162, %v162
  %v168 = vunpack.c.l.b16 %v91
  %v169 = vunpack.c.l.b16 %v92
  %v170 = vunpack.c.l.b16 %v93
  %v171 = vunpack.c.l.b16 %v94
  %v172 = vpack.c.b16 %v169, %v168
  %v173 = vpack.c.b16 %v171, %v170
  %176 = vmatpush.bf16.msra.mxu0 0
  %177 = vmatpush.bf16.msra.mxu0 0
  %178 = vmatpush.bf16.msra.mxu0 0
  %179 = vmatpush.bf16.msra.mxu0 0
  %180 = vmatpush.bf16.msra.mxu0 0
  %181 = vmatpush.bf16.msra.mxu0 0
  %182 = vmatpush.bf16.msra.mxu0 %v173
  %183 = vmatpush.bf16.msra.mxu0 %v172
  %184 = vmatmul.bf16.gmra.mxu0 %v110
  %v185 = vpop.f32.mrf.mxu0
  %v186 = vadd.f32 0.0, %v185
  %v187 = vpop.f32.mrf.mxu0
  %188 = vdwg.mxu0
  %190 = vrot.lane.b32.xlu0 %v163, 32
  %v191 = vpop.permute.xlu0 %190
  %v196 = vunpack.c.l.b16 %v87
  %v197 = vunpack.c.l.b16 %v88
  %v198 = vunpack.c.l.b16 %v89
  %v199 = vunpack.c.l.b16 %v90
  %v200 = vpack.c.b16 %v197, %v196
  %v201 = vpack.c.b16 %v199, %v198
  %v205 = vsel %vm108, %v191, 0
  %207 = vmatpush.bf16.msra.mxu0 0
  %208 = vmatpush.bf16.msra.mxu0 0
  %209 = vmatpush.bf16.msra.mxu0 0
  %210 = vmatpush.bf16.msra.mxu0 0
  %211 = vmatpush.bf16.msra.mxu0 0
  %212 = vmatpush.bf16.msra.mxu0 0
  %213 = vmatpush.bf16.msra.mxu0 %v201
  %214 = vmatpush.bf16.msra.mxu0 %v200
  %215 = vmatmul.bf16.gmra.mxu0 %v205
  %v216 = vpop.f32.mrf.mxu0
  %v217 = vadd.f32 %v186, %v216
  %v218 = vpop.f32.mrf.mxu0
  %219 = vdwg.mxu0
  %v220 = vperm.slane %v95, 0
  %v221 = vadd.f32 %v217, %v220
  %v222 = vxor.u32 %v221, 2147483648
  %v223 = vmul.f32 %v222, 1.442695
  %v224 = vpow.pop %v223
  %v225 = vadd.f32 %v224, 1.0
  %v226 = vrcp.pop %v225
  %v227 = vmul.f32 %v225, %v226
  %v228 = vsub.f32 1.0, %v227
  %v229 = vmul.f32 %v226, %v228
  %v230 = vadd.f32 %v226, %v229
  %vm231 = vweird.f32 %v225
  %vm232 = vweird.f32 %v226
  %vm233 = vmor %vm231, %vm232
  %v234 = vsel %vm233, %v226, %v230
  %v235 = vand.u32 2147483647, %v225
  %vm236 = vcmp.eq.f32.partialorder %v235, 8.507059e+37
  %v237 = vand.u32 %v225, 2147483648
  %v238 = vor.u32 1.1754944e-38, %v237
  %v239 = vsel %vm236, %v238, %v234
  %v240 = vmul.f32 1.0, %v239
  %v241 = vtanh.pop %v221
  %v242 = vmul.f32 %v240, 0.0
  %244 = vrot.lane.b32.xlu0 %v241, 64
  %v245 = vpop.permute.xlu0 %244
  %v247 = vmul.f32 %v240, %v245
  %249 = vrot.lane.b32.xlu0 %v247, 32
  %v250 = vpop.permute.xlu0 %249
  %v252 = vadd.f32 %v242, %v250
  %v253 = vtanh.pop %v252
  %255 = vrot.lane.b32.xlu0 %v253, 64
  %v256 = vpop.permute.xlu0 %255
  %v258 = vmul.f32 %v240, %v256
  %259 = vmatpush.bf16.msra.mxu0 0
  %260 = vmatpush.bf16.msra.mxu0 0
  %261 = vmatpush.bf16.msra.mxu0 0
  %262 = vmatpush.bf16.msra.mxu0 0
  %263 = vmatpush.bf16.msra.mxu0 0
  %264 = vmatpush.bf16.msra.mxu0 0
  %265 = vmatpush.bf16.msra.mxu0 %v105
  %266 = vmatpush.bf16.msra.mxu0 %v104
  %267 = vmatmul.bf16.gmra.mxu0 %v205
  %v268 = vpop.f32.mrf.mxu0
  %v269 = vadd.f32 0.0, %v268
  %v270 = vpop.f32.mrf.mxu0
  %271 = vdwg.mxu0
  %v272 = vadd.f32 %v76, %v269
  %v273 = vxor.u32 %v272, 2147483648
  %v274 = vmul.f32 %v273, 1.442695
  %v275 = vpow.pop %v274
  %v276 = vadd.f32 %v275, 1.0
  %v277 = vrcp.pop %v276
  %v278 = vmul.f32 %v276, %v277
  %v279 = vsub.f32 1.0, %v278
  %v280 = vmul.f32 %v277, %v279
  %v281 = vadd.f32 %v277, %v280
  %vm282 = vweird.f32 %v276
  %vm283 = vweird.f32 %v277
  %vm284 = vmor %vm282, %vm283
  %v285 = vsel %vm284, %v277, %v281
  %v286 = vand.u32 2147483647, %v276
  %vm287 = vcmp.eq.f32.partialorder %v286, 8.507059e+37
  %v288 = vand.u32 %v276, 2147483648
  %v289 = vor.u32 1.1754944e-38, %v288
  %v290 = vsel %vm287, %v289, %v285
  %v291 = vmul.f32 1.0, %v290
  %v292 = vtanh.pop %v272
  %v293 = vmul.f32 %v291, %v156
  %295 = vrot.lane.b32.xlu0 %v292, 64
  %v296 = vpop.permute.xlu0 %295
  %v298 = vmul.f32 %v291, %v296
  %300 = vrot.lane.b32.xlu0 %v298, 32
  %v301 = vpop.permute.xlu0 %300
  %v303 = vadd.f32 %v293, %v301
  %v304 = vtanh.pop %v303
  %306 = vrot.lane.b32.xlu0 %v304, 64
  %v307 = vpop.permute.xlu0 %306
  %v309 = vmul.f32 %v291, %v307
  %v310 = vpack.c.bf16 %v309, %v309
  %v311 = vpack.c.bf16 %v258, %v258
  %313 = vrot.lane.b32.xlu0 %v311, 32
  %v314 = vpop.permute.xlu0 %313
  %v316 = vsel %vm108, %v314, 0
  %318 = vmatpush.bf16.msra.mxu0 0
  %319 = vmatpush.bf16.msra.mxu0 0
  %320 = vmatpush.bf16.msra.mxu0 0
  %321 = vmatpush.bf16.msra.mxu0 0
  %322 = vmatpush.bf16.msra.mxu0 0
  %323 = vmatpush.bf16.msra.mxu0 0
  %324 = vmatpush.bf16.msra.mxu0 %v173
  %325 = vmatpush.bf16.msra.mxu0 %v172
  %326 = vmatmul.bf16.gmra.mxu0 %v316
  %v327 = vpop.f32.mrf.mxu0
  %v328 = vadd.f32 0.0, %v327
  %v329 = vpop.f32.mrf.mxu0
  %330 = vdwg.mxu0
  %332 = vrot.lane.b32.xlu0 %v310, 32
  %v333 = vpop.permute.xlu0 %332
  %v335 = vsel %vm108, %v333, 0
  %337 = vmatpush.bf16.msra.mxu0 0
  %338 = vmatpush.bf16.msra.mxu0 0
  %339 = vmatpush.bf16.msra.mxu0 0
  %340 = vmatpush.bf16.msra.mxu0 0
  %341 = vmatpush.bf16.msra.mxu0 0
  %342 = vmatpush.bf16.msra.mxu0 0
  %343 = vmatpush.bf16.msra.mxu0 %v201
  %344 = vmatpush.bf16.msra.mxu0 %v200
  %345 = vmatmul.bf16.gmra.mxu0 %v335
  %v346 = vpop.f32.mrf.mxu0
  %v347 = vadd.f32 %v328, %v346
  %v348 = vpop.f32.mrf.mxu0
  %349 = vdwg.mxu0
  %v350 = vadd.f32 %v347, %v220
  %v351 = vxor.u32 %v350, 2147483648
  %v352 = vmul.f32 %v351, 1.442695
  %v353 = vpow.pop %v352
  %v354 = vadd.f32 %v353, 1.0
  %v355 = vrcp.pop %v354
  %v356 = vmul.f32 %v354, %v355
  %v357 = vsub.f32 1.0, %v356
  %v358 = vmul.f32 %v355, %v357
  %v359 = vadd.f32 %v355, %v358
  %vm360 = vweird.f32 %v354
  %vm361 = vweird.f32 %v355
  %vm362 = vmor %vm360, %vm361
  %v363 = vsel %vm362, %v355, %v359
  %v364 = vand.u32 2147483647, %v354
  %vm365 = vcmp.eq.f32.partialorder %v364, 8.507059e+37
  %v366 = vand.u32 %v354, 2147483648
  %v367 = vor.u32 1.1754944e-38, %v366
  %v368 = vsel %vm365, %v367, %v363
  %v369 = vmul.f32 1.0, %v368
  %v370 = vtanh.pop %v350
  %v371 = vmul.f32 %v369, %v252
  %373 = vrot.lane.b32.xlu0 %v370, 64
  %v374 = vpop.permute.xlu0 %373
  %v376 = vmul.f32 %v369, %v374
  %378 = vrot.lane.b32.xlu0 %v376, 32
  %v379 = vpop.permute.xlu0 %378
  %v381 = vadd.f32 %v371, %v379
  %v382 = vtanh.pop %v381
  %384 = vrot.lane.b32.xlu0 %v382, 64
  %v385 = vpop.permute.xlu0 %384
  %v387 = vmul.f32 %v369, %v385
  %388 = vmatpush.bf16.msra.mxu0 0
  %389 = vmatpush.bf16.msra.mxu0 0
  %390 = vmatpush.bf16.msra.mxu0 0
  %391 = vmatpush.bf16.msra.mxu0 0
  %392 = vmatpush.bf16.msra.mxu0 0
  %393 = vmatpush.bf16.msra.mxu0 0
  %394 = vmatpush.bf16.msra.mxu0 %v105
  %395 = vmatpush.bf16.msra.mxu0 %v104
  %396 = vmatmul.bf16.gmra.mxu0 %v335
  %v397 = vpop.f32.mrf.mxu0
  %v398 = vadd.f32 0.0, %v397
  %v399 = vpop.f32.mrf.mxu0
  %400 = vdwg.mxu0
  %v401 = vadd.f32 %v77, %v398
  %v402 = vxor.u32 %v401, 2147483648
  %v403 = vmul.f32 %v402, 1.442695
  %v404 = vpow.pop %v403
  %v405 = vadd.f32 %v404, 1.0
  %v406 = vrcp.pop %v405
  %v407 = vmul.f32 %v405, %v406
  %v408 = vsub.f32 1.0, %v407
  %v409 = vmul.f32 %v406, %v408
  %v410 = vadd.f32 %v406, %v409
  %vm411 = vweird.f32 %v405
  %vm412 = vweird.f32 %v406
  %vm413 = vmor %vm411, %vm412
  %v414 = vsel %vm413, %v406, %v410
  %v415 = vand.u32 2147483647, %v405
  %vm416 = vcmp.eq.f32.partialorder %v415, 8.507059e+37
  %v417 = vand.u32 %v405, 2147483648
  %v418 = vor.u32 1.1754944e-38, %v417
  %v419 = vsel %vm416, %v418, %v414
  %v420 = vmul.f32 1.0, %v419
  %v421 = vtanh.pop %v401
  %v422 = vmul.f32 %v420, %v303
  %424 = vrot.lane.b32.xlu0 %v421, 64
  %v425 = vpop.permute.xlu0 %424
  %v427 = vmul.f32 %v420, %v425
  %429 = vrot.lane.b32.xlu0 %v427, 32
  %v430 = vpop.permute.xlu0 %429
  %v432 = vadd.f32 %v422, %v430
  %v433 = vtanh.pop %v432
  %435 = vrot.lane.b32.xlu0 %v433, 64
  %v436 = vpop.permute.xlu0 %435
  %v438 = vmul.f32 %v420, %v436
  %v439 = vpack.c.bf16 %v438, %v438
  %v440 = vpack.c.bf16 %v387, %v387
  %442 = vrot.lane.b32.xlu0 %v440, 32
  %v443 = vpop.permute.xlu0 %442
  %v445 = vsel %vm108, %v443, 0
  %447 = vmatpush.bf16.msra.mxu0 0
  %448 = vmatpush.bf16.msra.mxu0 0
  %449 = vmatpush.bf16.msra.mxu0 0
  %450 = vmatpush.bf16.msra.mxu0 0
  %451 = vmatpush.bf16.msra.mxu0 0
  %452 = vmatpush.bf16.msra.mxu0 0
  %453 = vmatpush.bf16.msra.mxu0 %v173
  %454 = vmatpush.bf16.msra.mxu0 %v172
  %455 = vmatmul.bf16.gmra.mxu0 %v445
  %v456 = vpop.f32.mrf.mxu0
  %v457 = vadd.f32 0.0, %v456
  %v458 = vpop.f32.mrf.mxu0
  %459 = vdwg.mxu0
  %461 = vrot.lane.b32.xlu0 %v439, 32
  %v462 = vpop.permute.xlu0 %461
  %v464 = vsel %vm108, %v462, 0
  %466 = vmatpush.bf16.msra.mxu0 0
  %467 = vmatpush.bf16.msra.mxu0 0
  %468 = vmatpush.bf16.msra.mxu0 0
  %469 = vmatpush.bf16.msra.mxu0 0
  %470 = vmatpush.bf16.msra.mxu0 0
  %471 = vmatpush.bf16.msra.mxu0 0
  %472 = vmatpush.bf16.msra.mxu0 %v201
  %473 = vmatpush.bf16.msra.mxu0 %v200
  %474 = vmatmul.bf16.gmra.mxu0 %v464
  %v475 = vpop.f32.mrf.mxu0
  %v476 = vadd.f32 %v457, %v475
  %v477 = vpop.f32.mrf.mxu0
  %478 = vdwg.mxu0
  %v479 = vadd.f32 %v476, %v220
  %v480 = vxor.u32 %v479, 2147483648
  %v481 = vmul.f32 %v480, 1.442695
  %v482 = vpow.pop %v481
  %v483 = vadd.f32 %v482, 1.0
  %v484 = vrcp.pop %v483
  %v485 = vmul.f32 %v483, %v484
  %v486 = vsub.f32 1.0, %v485
  %v487 = vmul.f32 %v484, %v486
  %v488 = vadd.f32 %v484, %v487
  %vm489 = vweird.f32 %v483
  %vm490 = vweird.f32 %v484
  %vm491 = vmor %vm489, %vm490
  %v492 = vsel %vm491, %v484, %v488
  %v493 = vand.u32 2147483647, %v483
  %vm494 = vcmp.eq.f32.partialorder %v493, 8.507059e+37
  %v495 = vand.u32 %v483, 2147483648
  %v496 = vor.u32 1.1754944e-38, %v495
  %v497 = vsel %vm494, %v496, %v492
  %v498 = vmul.f32 1.0, %v497
  %v499 = vtanh.pop %v479
  %v500 = vmul.f32 %v498, %v381
  %502 = vrot.lane.b32.xlu0 %v499, 64
  %v503 = vpop.permute.xlu0 %502
  %v505 = vmul.f32 %v498, %v503
  %507 = vrot.lane.b32.xlu0 %v505, 32
  %v508 = vpop.permute.xlu0 %507
  %v510 = vadd.f32 %v500, %v508
  %v511 = vtanh.pop %v510
  %513 = vrot.lane.b32.xlu0 %v511, 64
  %v514 = vpop.permute.xlu0 %513
  %v516 = vmul.f32 %v498, %v514
  %517 = vmatpush.bf16.msra.mxu0 0
  %518 = vmatpush.bf16.msra.mxu0 0
  %519 = vmatpush.bf16.msra.mxu0 0
  %520 = vmatpush.bf16.msra.mxu0 0
  %521 = vmatpush.bf16.msra.mxu0 0
  %522 = vmatpush.bf16.msra.mxu0 0
  %523 = vmatpush.bf16.msra.mxu0 %v105
  %524 = vmatpush.bf16.msra.mxu0 %v104
  %525 = vmatmul.bf16.gmra.mxu0 %v464
  %v526 = vpop.f32.mrf.mxu0
  %v527 = vadd.f32 0.0, %v526
  %v528 = vpop.f32.mrf.mxu0
  %529 = vdwg.mxu0
  %v530 = vadd.f32 %v78, %v527
  %v531 = vxor.u32 %v530, 2147483648
  %v532 = vmul.f32 %v531, 1.442695
  %v533 = vpow.pop %v532
  %v534 = vadd.f32 %v533, 1.0
  %v535 = vrcp.pop %v534
  %v536 = vmul.f32 %v534, %v535
  %v537 = vsub.f32 1.0, %v536
  %v538 = vmul.f32 %v535, %v537
  %v539 = vadd.f32 %v535, %v538
  %vm540 = vweird.f32 %v534
  %vm541 = vweird.f32 %v535
  %vm542 = vmor %vm540, %vm541
  %v543 = vsel %vm542, %v535, %v539
  %v544 = vand.u32 2147483647, %v534
  %vm545 = vcmp.eq.f32.partialorder %v544, 8.507059e+37
  %v546 = vand.u32 %v534, 2147483648
  %v547 = vor.u32 1.1754944e-38, %v546
  %v548 = vsel %vm545, %v547, %v543
  %v549 = vmul.f32 1.0, %v548
  %v550 = vtanh.pop %v530
  %v551 = vmul.f32 %v549, %v432
  %553 = vrot.lane.b32.xlu0 %v550, 64
  %v554 = vpop.permute.xlu0 %553
  %v556 = vmul.f32 %v549, %v554
  %558 = vrot.lane.b32.xlu0 %v556, 32
  %v559 = vpop.permute.xlu0 %558
  %v561 = vadd.f32 %v551, %v559
  %v562 = vtanh.pop %v561
  %564 = vrot.lane.b32.xlu0 %v562, 64
  %v565 = vpop.permute.xlu0 %564
  %v567 = vmul.f32 %v549, %v565
  %v568 = vpack.c.bf16 %v567, %v567
  %v569 = vpack.c.bf16 %v516, %v516
  %571 = vrot.lane.b32.xlu0 %v569, 32
  %v572 = vpop.permute.xlu0 %571
  %v574 = vsel %vm108, %v572, 0
  %576 = vmatpush.bf16.msra.mxu0 0
  %577 = vmatpush.bf16.msra.mxu0 0
  %578 = vmatpush.bf16.msra.mxu0 0
  %579 = vmatpush.bf16.msra.mxu0 0
  %580 = vmatpush.bf16.msra.mxu0 0
  %581 = vmatpush.bf16.msra.mxu0 0
  %582 = vmatpush.bf16.msra.mxu0 %v173
  %583 = vmatpush.bf16.msra.mxu0 %v172
  %584 = vmatmul.bf16.gmra.mxu0 %v574
  %v585 = vpop.f32.mrf.mxu0
  %v586 = vadd.f32 0.0, %v585
  %v587 = vpop.f32.mrf.mxu0
  %588 = vdwg.mxu0
  %590 = vrot.lane.b32.xlu0 %v568, 32
  %v591 = vpop.permute.xlu0 %590
  %v593 = vsel %vm108, %v591, 0
  %595 = vmatpush.bf16.msra.mxu0 0
  %596 = vmatpush.bf16.msra.mxu0 0
  %597 = vmatpush.bf16.msra.mxu0 0
  %598 = vmatpush.bf16.msra.mxu0 0
  %599 = vmatpush.bf16.msra.mxu0 0
  %600 = vmatpush.bf16.msra.mxu0 0
  %601 = vmatpush.bf16.msra.mxu0 %v201
  %602 = vmatpush.bf16.msra.mxu0 %v200
  %603 = vmatmul.bf16.gmra.mxu0 %v593
  %v604 = vpop.f32.mrf.mxu0
  %v605 = vadd.f32 %v586, %v604
  %v606 = vpop.f32.mrf.mxu0
  %607 = vdwg.mxu0
  %v608 = vadd.f32 %v605, %v220
  %v609 = vxor.u32 %v608, 2147483648
  %v610 = vmul.f32 %v609, 1.442695
  %v611 = vpow.pop %v610
  %v612 = vadd.f32 %v611, 1.0
  %v613 = vrcp.pop %v612
  %v614 = vmul.f32 %v612, %v613
  %v615 = vsub.f32 1.0, %v614
  %v616 = vmul.f32 %v613, %v615
  %v617 = vadd.f32 %v613, %v616
  %vm618 = vweird.f32 %v612
  %vm619 = vweird.f32 %v613
  %vm620 = vmor %vm618, %vm619
  %v621 = vsel %vm620, %v613, %v617
  %v622 = vand.u32 2147483647, %v612
  %vm623 = vcmp.eq.f32.partialorder %v622, 8.507059e+37
  %v624 = vand.u32 %v612, 2147483648
  %v625 = vor.u32 1.1754944e-38, %v624
  %v626 = vsel %vm623, %v625, %v621
  %v627 = vmul.f32 1.0, %v626
  %v628 = vtanh.pop %v608
  %v629 = vmul.f32 %v627, %v510
  %631 = vrot.lane.b32.xlu0 %v628, 64
  %v632 = vpop.permute.xlu0 %631
  %v634 = vmul.f32 %v627, %v632
  %636 = vrot.lane.b32.xlu0 %v634, 32
  %v637 = vpop.permute.xlu0 %636
  %v639 = vadd.f32 %v629, %v637
  %v640 = vtanh.pop %v639
  %642 = vrot.lane.b32.xlu0 %v640, 64
  %v643 = vpop.permute.xlu0 %642
  %v645 = vmul.f32 %v627, %v643
  %646 = vmatpush.bf16.msra.mxu0 0
  %647 = vmatpush.bf16.msra.mxu0 0
  %648 = vmatpush.bf16.msra.mxu0 0
  %649 = vmatpush.bf16.msra.mxu0 0
  %650 = vmatpush.bf16.msra.mxu0 0
  %651 = vmatpush.bf16.msra.mxu0 0
  %652 = vmatpush.bf16.msra.mxu0 %v105
  %653 = vmatpush.bf16.msra.mxu0 %v104
  %654 = vmatmul.bf16.gmra.mxu0 %v593
  %v655 = vpop.f32.mrf.mxu0
  %v656 = vadd.f32 0.0, %v655
  %v657 = vpop.f32.mrf.mxu0
  %658 = vdwg.mxu0
  %v659 = vadd.f32 %v79, %v656
  %v660 = vxor.u32 %v659, 2147483648
  %v661 = vmul.f32 %v660, 1.442695
  %v662 = vpow.pop %v661
  %v663 = vadd.f32 %v662, 1.0
  %v664 = vrcp.pop %v663
  %v665 = vmul.f32 %v663, %v664
  %v666 = vsub.f32 1.0, %v665
  %v667 = vmul.f32 %v664, %v666
  %v668 = vadd.f32 %v664, %v667
  %vm669 = vweird.f32 %v663
  %vm670 = vweird.f32 %v664
  %vm671 = vmor %vm669, %vm670
  %v672 = vsel %vm671, %v664, %v668
  %v673 = vand.u32 2147483647, %v663
  %vm674 = vcmp.eq.f32.partialorder %v673, 8.507059e+37
  %v675 = vand.u32 %v663, 2147483648
  %v676 = vor.u32 1.1754944e-38, %v675
  %v677 = vsel %vm674, %v676, %v672
  %v678 = vmul.f32 1.0, %v677
  %v679 = vtanh.pop %v659
  %v680 = vmul.f32 %v678, %v561
  %682 = vrot.lane.b32.xlu0 %v679, 64
  %v683 = vpop.permute.xlu0 %682
  %v685 = vmul.f32 %v678, %v683
  %687 = vrot.lane.b32.xlu0 %v685, 32
  %v688 = vpop.permute.xlu0 %687
  %v690 = vadd.f32 %v680, %v688
  %v691 = vtanh.pop %v690
  %693 = vrot.lane.b32.xlu0 %v691, 64
  %v694 = vpop.permute.xlu0 %693
  %v696 = vmul.f32 %v678, %v694
  %v697 = vpack.c.bf16 %v696, %v696
  %v698 = vpack.c.bf16 %v645, %v645
  %700 = vrot.lane.b32.xlu0 %v698, 32
  %v701 = vpop.permute.xlu0 %700
  %v703 = vsel %vm108, %v701, 0
  %705 = vmatpush.bf16.msra.mxu0 0
  %706 = vmatpush.bf16.msra.mxu0 0
  %707 = vmatpush.bf16.msra.mxu0 0
  %708 = vmatpush.bf16.msra.mxu0 0
  %709 = vmatpush.bf16.msra.mxu0 0
  %710 = vmatpush.bf16.msra.mxu0 0
  %711 = vmatpush.bf16.msra.mxu0 %v173
  %712 = vmatpush.bf16.msra.mxu0 %v172
  %713 = vmatmul.bf16.gmra.mxu0 %v703
  %v714 = vpop.f32.mrf.mxu0
  %v715 = vadd.f32 0.0, %v714
  %v716 = vpop.f32.mrf.mxu0
  %717 = vdwg.mxu0
  %719 = vrot.lane.b32.xlu0 %v697, 32
  %v720 = vpop.permute.xlu0 %719
  %v722 = vsel %vm108, %v720, 0
  %724 = vmatpush.bf16.msra.mxu0 0
  %725 = vmatpush.bf16.msra.mxu0 0
  %726 = vmatpush.bf16.msra.mxu0 0
  %727 = vmatpush.bf16.msra.mxu0 0
  %728 = vmatpush.bf16.msra.mxu0 0
  %729 = vmatpush.bf16.msra.mxu0 0
  %730 = vmatpush.bf16.msra.mxu0 %v201
  %731 = vmatpush.bf16.msra.mxu0 %v200
  %732 = vmatmul.bf16.gmra.mxu0 %v722
  %v733 = vpop.f32.mrf.mxu0
  %v734 = vadd.f32 %v715, %v733
  %v735 = vpop.f32.mrf.mxu0
  %736 = vdwg.mxu0
  %v737 = vadd.f32 %v734, %v220
  %v738 = vxor.u32 %v737, 2147483648
  %v739 = vmul.f32 %v738, 1.442695
  %v740 = vpow.pop %v739
  %v741 = vadd.f32 %v740, 1.0
  %v742 = vrcp.pop %v741
  %v743 = vmul.f32 %v741, %v742
  %v744 = vsub.f32 1.0, %v743
  %v745 = vmul.f32 %v742, %v744
  %v746 = vadd.f32 %v742, %v745
  %vm747 = vweird.f32 %v741
  %vm748 = vweird.f32 %v742
  %vm749 = vmor %vm747, %vm748
  %v750 = vsel %vm749, %v742, %v746
  %v751 = vand.u32 2147483647, %v741
  %vm752 = vcmp.eq.f32.partialorder %v751, 8.507059e+37
  %v753 = vand.u32 %v741, 2147483648
  %v754 = vor.u32 1.1754944e-38, %v753
  %v755 = vsel %vm752, %v754, %v750
  %v756 = vmul.f32 1.0, %v755
  %v757 = vtanh.pop %v737
  %v758 = vmul.f32 %v756, %v639
  %760 = vrot.lane.b32.xlu0 %v757, 64
  %v761 = vpop.permute.xlu0 %760
  %v763 = vmul.f32 %v756, %v761
  %765 = vrot.lane.b32.xlu0 %v763, 32
  %v766 = vpop.permute.xlu0 %765
  %v768 = vadd.f32 %v758, %v766
  %v769 = vtanh.pop %v768
  %771 = vrot.lane.b32.xlu0 %v769, 64
  %v772 = vpop.permute.xlu0 %771
  %v774 = vmul.f32 %v756, %v772
  %775 = vmatpush.bf16.msra.mxu0 0
  %776 = vmatpush.bf16.msra.mxu0 0
  %777 = vmatpush.bf16.msra.mxu0 0
  %778 = vmatpush.bf16.msra.mxu0 0
  %779 = vmatpush.bf16.msra.mxu0 0
  %780 = vmatpush.bf16.msra.mxu0 0
  %781 = vmatpush.bf16.msra.mxu0 %v105
  %782 = vmatpush.bf16.msra.mxu0 %v104
  %783 = vmatmul.bf16.gmra.mxu0 %v722
  %v784 = vpop.f32.mrf.mxu0
  %v785 = vadd.f32 0.0, %v784
  %v786 = vpop.f32.mrf.mxu0
  %787 = vdwg.mxu0
  %v788 = vadd.f32 %v80, %v785
  %v789 = vxor.u32 %v788, 2147483648
  %v790 = vmul.f32 %v789, 1.442695
  %v791 = vpow.pop %v790
  %v792 = vadd.f32 %v791, 1.0
  %v793 = vrcp.pop %v792
  %v794 = vmul.f32 %v792, %v793
  %v795 = vsub.f32 1.0, %v794
  %v796 = vmul.f32 %v793, %v795
  %v797 = vadd.f32 %v793, %v796
  %vm798 = vweird.f32 %v792
  %vm799 = vweird.f32 %v793
  %vm800 = vmor %vm798, %vm799
  %v801 = vsel %vm800, %v793, %v797
  %v802 = vand.u32 2147483647, %v792
  %vm803 = vcmp.eq.f32.partialorder %v802, 8.507059e+37
  %v804 = vand.u32 %v792, 2147483648
  %v805 = vor.u32 1.1754944e-38, %v804
  %v806 = vsel %vm803, %v805, %v801
  %v807 = vmul.f32 1.0, %v806
  %v808 = vtanh.pop %v788
  %v809 = vmul.f32 %v807, %v690
  %811 = vrot.lane.b32.xlu0 %v808, 64
  %v812 = vpop.permute.xlu0 %811
  %v814 = vmul.f32 %v807, %v812
  %816 = vrot.lane.b32.xlu0 %v814, 32
  %v817 = vpop.permute.xlu0 %816
  %v819 = vadd.f32 %v809, %v817
  %v820 = vtanh.pop %v819
  %822 = vrot.lane.b32.xlu0 %v820, 64
  %v823 = vpop.permute.xlu0 %822
  %v825 = vmul.f32 %v807, %v823
  %v826 = vpack.c.bf16 %v825, %v825
  %v827 = vpack.c.bf16 %v774, %v774
  %829 = vrot.lane.b32.xlu0 %v827, 32
  %v830 = vpop.permute.xlu0 %829
  %v832 = vsel %vm108, %v830, 0
  %834 = vmatpush.bf16.msra.mxu0 0
  %835 = vmatpush.bf16.msra.mxu0 0
  %836 = vmatpush.bf16.msra.mxu0 0
  %837 = vmatpush.bf16.msra.mxu0 0
  %838 = vmatpush.bf16.msra.mxu0 0
  %839 = vmatpush.bf16.msra.mxu0 0
  %840 = vmatpush.bf16.msra.mxu0 %v173
  %841 = vmatpush.bf16.msra.mxu0 %v172
  %842 = vmatmul.bf16.gmra.mxu0 %v832
  %v843 = vpop.f32.mrf.mxu0
  %v844 = vadd.f32 0.0, %v843
  %v845 = vpop.f32.mrf.mxu0
  %846 = vdwg.mxu0
  %848 = vrot.lane.b32.xlu0 %v826, 32
  %v849 = vpop.permute.xlu0 %848
  %v851 = vsel %vm108, %v849, 0
  %853 = vmatpush.bf16.msra.mxu0 0
  %854 = vmatpush.bf16.msra.mxu0 0
  %855 = vmatpush.bf16.msra.mxu0 0
  %856 = vmatpush.bf16.msra.mxu0 0
  %857 = vmatpush.bf16.msra.mxu0 0
  %858 = vmatpush.bf16.msra.mxu0 0
  %859 = vmatpush.bf16.msra.mxu0 %v201
  %860 = vmatpush.bf16.msra.mxu0 %v200
  %861 = vmatmul.bf16.gmra.mxu0 %v851
  %v862 = vpop.f32.mrf.mxu0
  %v863 = vadd.f32 %v844, %v862
  %v864 = vpop.f32.mrf.mxu0
  %865 = vdwg.mxu0
  %v866 = vadd.f32 %v863, %v220
  %v867 = vxor.u32 %v866, 2147483648
  %v868 = vmul.f32 %v867, 1.442695
  %v869 = vpow.pop %v868
  %v870 = vadd.f32 %v869, 1.0
  %v871 = vrcp.pop %v870
  %v872 = vmul.f32 %v870, %v871
  %v873 = vsub.f32 1.0, %v872
  %v874 = vmul.f32 %v871, %v873
  %v875 = vadd.f32 %v871, %v874
  %vm876 = vweird.f32 %v870
  %vm877 = vweird.f32 %v871
  %vm878 = vmor %vm876, %vm877
  %v879 = vsel %vm878, %v871, %v875
  %v880 = vand.u32 2147483647, %v870
  %vm881 = vcmp.eq.f32.partialorder %v880, 8.507059e+37
  %v882 = vand.u32 %v870, 2147483648
  %v883 = vor.u32 1.1754944e-38, %v882
  %v884 = vsel %vm881, %v883, %v879
  %v885 = vmul.f32 1.0, %v884
  %v886 = vtanh.pop %v866
  %v887 = vmul.f32 %v885, %v768
  %889 = vrot.lane.b32.xlu0 %v886, 64
  %v890 = vpop.permute.xlu0 %889
  %v892 = vmul.f32 %v885, %v890
  %894 = vrot.lane.b32.xlu0 %v892, 32
  %v895 = vpop.permute.xlu0 %894
  %v897 = vadd.f32 %v887, %v895
  %v898 = vtanh.pop %v897
  %900 = vrot.lane.b32.xlu0 %v898, 64
  %v901 = vpop.permute.xlu0 %900
  %v903 = vmul.f32 %v885, %v901
  %904 = vmatpush.bf16.msra.mxu0 0
  %905 = vmatpush.bf16.msra.mxu0 0
  %906 = vmatpush.bf16.msra.mxu0 0
  %907 = vmatpush.bf16.msra.mxu0 0
  %908 = vmatpush.bf16.msra.mxu0 0
  %909 = vmatpush.bf16.msra.mxu0 0
  %910 = vmatpush.bf16.msra.mxu0 %v105
  %911 = vmatpush.bf16.msra.mxu0 %v104
  %912 = vmatmul.bf16.gmra.mxu0 %v851
  %v913 = vpop.f32.mrf.mxu0
  %v914 = vadd.f32 0.0, %v913
  %v915 = vpop.f32.mrf.mxu0
  %916 = vdwg.mxu0
  %v917 = vadd.f32 %v81, %v914
  %v918 = vxor.u32 %v917, 2147483648
  %v919 = vmul.f32 %v918, 1.442695
  %v920 = vpow.pop %v919
  %v921 = vadd.f32 %v920, 1.0
  %v922 = vrcp.pop %v921
  %v923 = vmul.f32 %v921, %v922
  %v924 = vsub.f32 1.0, %v923
  %v925 = vmul.f32 %v922, %v924
  %v926 = vadd.f32 %v922, %v925
  %vm927 = vweird.f32 %v921
  %vm928 = vweird.f32 %v922
  %vm929 = vmor %vm927, %vm928
  %v930 = vsel %vm929, %v922, %v926
  %v931 = vand.u32 2147483647, %v921
  %vm932 = vcmp.eq.f32.partialorder %v931, 8.507059e+37
  %v933 = vand.u32 %v921, 2147483648
  %v934 = vor.u32 1.1754944e-38, %v933
  %v935 = vsel %vm932, %v934, %v930
  %v936 = vmul.f32 1.0, %v935
  %v937 = vtanh.pop %v917
  %v938 = vmul.f32 %v936, %v819
  %940 = vrot.lane.b32.xlu0 %v937, 64
  %v941 = vpop.permute.xlu0 %940
  %v943 = vmul.f32 %v936, %v941
  %945 = vrot.lane.b32.xlu0 %v943, 32
  %v946 = vpop.permute.xlu0 %945
  %v948 = vadd.f32 %v938, %v946
  %v949 = vtanh.pop %v948
  %951 = vrot.lane.b32.xlu0 %v949, 64
  %v952 = vpop.permute.xlu0 %951
  %v954 = vmul.f32 %v936, %v952
  %v955 = vpack.c.bf16 %v954, %v954
  %v956 = vpack.c.bf16 %v903, %v903
  %958 = vrot.lane.b32.xlu0 %v956, 32
  %v959 = vpop.permute.xlu0 %958
  %v961 = vsel %vm108, %v959, 0
  %963 = vmatpush.bf16.msra.mxu0 0
  %964 = vmatpush.bf16.msra.mxu0 0
  %965 = vmatpush.bf16.msra.mxu0 0
  %966 = vmatpush.bf16.msra.mxu0 0
  %967 = vmatpush.bf16.msra.mxu0 0
  %968 = vmatpush.bf16.msra.mxu0 0
  %969 = vmatpush.bf16.msra.mxu0 %v173
  %970 = vmatpush.bf16.msra.mxu0 %v172
  %971 = vmatmul.bf16.gmra.mxu0 %v961
  %v972 = vpop.f32.mrf.mxu0
  %v973 = vadd.f32 0.0, %v972
  %v974 = vpop.f32.mrf.mxu0
  %975 = vdwg.mxu0
  %977 = vrot.lane.b32.xlu0 %v955, 32
  %v978 = vpop.permute.xlu0 %977
  %v980 = vsel %vm108, %v978, 0
  %982 = vmatpush.bf16.msra.mxu0 0
  %983 = vmatpush.bf16.msra.mxu0 0
  %984 = vmatpush.bf16.msra.mxu0 0
  %985 = vmatpush.bf16.msra.mxu0 0
  %986 = vmatpush.bf16.msra.mxu0 0
  %987 = vmatpush.bf16.msra.mxu0 0
  %988 = vmatpush.bf16.msra.mxu0 %v201
  %989 = vmatpush.bf16.msra.mxu0 %v200
  %990 = vmatmul.bf16.gmra.mxu0 %v980
  %v991 = vpop.f32.mrf.mxu0
  %v992 = vadd.f32 %v973, %v991
  %v993 = vpop.f32.mrf.mxu0
  %994 = vdwg.mxu0
  %v995 = vadd.f32 %v992, %v220
  %v996 = vxor.u32 %v995, 2147483648
  %v997 = vmul.f32 %v996, 1.442695
  %v998 = vpow.pop %v997
  %v999 = vadd.f32 %v998, 1.0
  %v1000 = vrcp.pop %v999
  %v1001 = vmul.f32 %v999, %v1000
  %v1002 = vsub.f32 1.0, %v1001
  %v1003 = vmul.f32 %v1000, %v1002
  %v1004 = vadd.f32 %v1000, %v1003
  %vm1005 = vweird.f32 %v999
  %vm1006 = vweird.f32 %v1000
  %vm1007 = vmor %vm1005, %vm1006
  %v1008 = vsel %vm1007, %v1000, %v1004
  %v1009 = vand.u32 2147483647, %v999
  %vm1010 = vcmp.eq.f32.partialorder %v1009, 8.507059e+37
  %v1011 = vand.u32 %v999, 2147483648
  %v1012 = vor.u32 1.1754944e-38, %v1011
  %v1013 = vsel %vm1010, %v1012, %v1008
  %v1014 = vmul.f32 1.0, %v1013
  %v1015 = vtanh.pop %v995
  %v1016 = vmul.f32 %v1014, %v897
  %1018 = vrot.lane.b32.xlu0 %v1015, 64
  %v1019 = vpop.permute.xlu0 %1018
  %v1021 = vmul.f32 %v1014, %v1019
  %1023 = vrot.lane.b32.xlu0 %v1021, 32
  %v1024 = vpop.permute.xlu0 %1023
  %v1026 = vadd.f32 %v1016, %v1024
  %v1027 = vtanh.pop %v1026
  %1029 = vrot.lane.b32.xlu0 %v1027, 64
  %v1030 = vpop.permute.xlu0 %1029
  %v1032 = vmul.f32 %v1014, %v1030
  %1033 = vmatpush.bf16.msra.mxu0 0
  %1034 = vmatpush.bf16.msra.mxu0 0
  %1035 = vmatpush.bf16.msra.mxu0 0
  %1036 = vmatpush.bf16.msra.mxu0 0
  %1037 = vmatpush.bf16.msra.mxu0 0
  %1038 = vmatpush.bf16.msra.mxu0 0
  %1039 = vmatpush.bf16.msra.mxu0 %v105
  %1040 = vmatpush.bf16.msra.mxu0 %v104
  %1041 = vmatmul.bf16.gmra.mxu0 %v980
  %v1042 = vpop.f32.mrf.mxu0
  %v1043 = vadd.f32 0.0, %v1042
  %v1044 = vpop.f32.mrf.mxu0
  %1045 = vdwg.mxu0
  %v1046 = vadd.f32 %v82, %v1043
  %v1047 = vxor.u32 %v1046, 2147483648
  %v1048 = vmul.f32 %v1047, 1.442695
  %v1049 = vpow.pop %v1048
  %v1050 = vadd.f32 %v1049, 1.0
  %v1051 = vrcp.pop %v1050
  %v1052 = vmul.f32 %v1050, %v1051
  %v1053 = vsub.f32 1.0, %v1052
  %v1054 = vmul.f32 %v1051, %v1053
  %v1055 = vadd.f32 %v1051, %v1054
  %vm1056 = vweird.f32 %v1050
  %vm1057 = vweird.f32 %v1051
  %vm1058 = vmor %vm1056, %vm1057
  %v1059 = vsel %vm1058, %v1051, %v1055
  %v1060 = vand.u32 2147483647, %v1050
  %vm1061 = vcmp.eq.f32.partialorder %v1060, 8.507059e+37
  %v1062 = vand.u32 %v1050, 2147483648
  %v1063 = vor.u32 1.1754944e-38, %v1062
  %v1064 = vsel %vm1061, %v1063, %v1059
  %v1065 = vmul.f32 1.0, %v1064
  %v1066 = vtanh.pop %v1046
  %v1067 = vmul.f32 %v1065, %v948
  %1069 = vrot.lane.b32.xlu0 %v1066, 64
  %v1070 = vpop.permute.xlu0 %1069
  %v1072 = vmul.f32 %v1065, %v1070
  %1074 = vrot.lane.b32.xlu0 %v1072, 32
  %v1075 = vpop.permute.xlu0 %1074
  %v1077 = vadd.f32 %v1067, %v1075
  %v1078 = vtanh.pop %v1077
  %1080 = vrot.lane.b32.xlu0 %v1078, 64
  %v1081 = vpop.permute.xlu0 %1080
  %v1083 = vmul.f32 %v1065, %v1081
  %v1084 = vpack.c.bf16 %v1083, %v1083
  %v1085 = vpack.c.bf16 %v1032, %v1032
  %1087 = vrot.lane.b32.xlu0 %v1085, 32
  %v1088 = vpop.permute.xlu0 %1087
  %v1090 = vsel %vm108, %v1088, 0
  %1092 = vmatpush.bf16.msra.mxu0 0
  %1093 = vmatpush.bf16.msra.mxu0 0
  %1094 = vmatpush.bf16.msra.mxu0 0
  %1095 = vmatpush.bf16.msra.mxu0 0
  %1096 = vmatpush.bf16.msra.mxu0 0
  %1097 = vmatpush.bf16.msra.mxu0 0
  %1098 = vmatpush.bf16.msra.mxu0 %v173
  %1099 = vmatpush.bf16.msra.mxu0 %v172
  %1100 = vmatmul.bf16.gmra.mxu0 %v1090
  %v1101 = vpop.f32.mrf.mxu0
  %v1102 = vadd.f32 0.0, %v1101
  %v1103 = vpop.f32.mrf.mxu0
  %1104 = vdwg.mxu0
  %1106 = vrot.lane.b32.xlu0 %v1084, 32
  %v1107 = vpop.permute.xlu0 %1106
  %v1109 = vsel %vm108, %v1107, 0
  %1111 = vmatpush.bf16.msra.mxu0 0
  %1112 = vmatpush.bf16.msra.mxu0 0
  %1113 = vmatpush.bf16.msra.mxu0 0
  %1114 = vmatpush.bf16.msra.mxu0 0
  %1115 = vmatpush.bf16.msra.mxu0 0
  %1116 = vmatpush.bf16.msra.mxu0 0
  %1117 = vmatpush.bf16.msra.mxu0 %v201
  %1118 = vmatpush.bf16.msra.mxu0 %v200
  %1119 = vmatmul.bf16.gmra.mxu0 %v1109
  %v1120 = vpop.f32.mrf.mxu0
  %v1121 = vadd.f32 %v1102, %v1120
  %v1122 = vpop.f32.mrf.mxu0
  %1123 = vdwg.mxu0
  %v1124 = vadd.f32 %v1121, %v220
  %v1125 = vxor.u32 %v1124, 2147483648
  %v1126 = vmul.f32 %v1125, 1.442695
  %v1127 = vpow.pop %v1126
  %v1128 = vadd.f32 %v1127, 1.0
  %v1129 = vrcp.pop %v1128
  %v1130 = vmul.f32 %v1128, %v1129
  %v1131 = vsub.f32 1.0, %v1130
  %v1132 = vmul.f32 %v1129, %v1131
  %v1133 = vadd.f32 %v1129, %v1132
  %vm1134 = vweird.f32 %v1128
  %vm1135 = vweird.f32 %v1129
  %vm1136 = vmor %vm1134, %vm1135
  %v1137 = vsel %vm1136, %v1129, %v1133
  %v1138 = vand.u32 2147483647, %v1128
  %vm1139 = vcmp.eq.f32.partialorder %v1138, 8.507059e+37
  %v1140 = vand.u32 %v1128, 2147483648
  %v1141 = vor.u32 1.1754944e-38, %v1140
  %v1142 = vsel %vm1139, %v1141, %v1137
  %v1143 = vmul.f32 1.0, %v1142
  %v1144 = vtanh.pop %v1124
  %v1145 = vmul.f32 %v1143, %v1026
  %1147 = vrot.lane.b32.xlu0 %v1144, 64
  %v1148 = vpop.permute.xlu0 %1147
  %v1150 = vmul.f32 %v1143, %v1148
  %1152 = vrot.lane.b32.xlu0 %v1150, 32
  %v1153 = vpop.permute.xlu0 %1152
  %v1155 = vadd.f32 %v1145, %v1153
  %v1156 = vtanh.pop %v1155
  %1158 = vrot.lane.b32.xlu0 %v1156, 64
  %v1159 = vpop.permute.xlu0 %1158
  %v1161 = vmul.f32 %v1143, %v1159
  %v1162 = vld [vmem:[%s1 + $0x30] sm:$0xf]
  %v1163 = vld [vmem:[%s1 + $0x34] sm:$0xf]
  %v1164 = vld [vmem:[%s1 + $0x38] sm:$0xf]
  %v1165 = vld [vmem:[%s1 + $0x3c] sm:$0xf]
  %v1166 = vld [vmem:[%s2 + $0x3] sm:$0x1]
  %v1167 = vld [vmem:[%s1 + $0x40] sm:$0xf]
  %v1168 = vld [vmem:[%s1 + $0x44] sm:$0xf]
  %v1169 = vld [vmem:[%s2 + $0x4] sm:$0x1]
  %v1170 = vpack.c.bf16 %v1161, %v1161
  %v1171 = vperm.slane %v1166, 0
  %1173 = vrot.lane.b32.xlu0 %v1170, 32
  %v1174 = vpop.permute.xlu0 %1173
  %v1179 = vunpack.c.l.b16 %v1162
  %v1180 = vunpack.c.l.b16 %v1163
  %v1181 = vunpack.c.l.b16 %v1164
  %v1182 = vunpack.c.l.b16 %v1165
  %v1183 = vpack.c.b16 %v1180, %v1179
  %v1184 = vpack.c.b16 %v1182, %v1181
  %v1188 = vsel %vm108, %v1174, 0
  %1190 = vmatpush.bf16.msra.mxu0 0
  %1191 = vmatpush.bf16.msra.mxu0 0
  %1192 = vmatpush.bf16.msra.mxu0 0
  %1193 = vmatpush.bf16.msra.mxu0 0
  %1194 = vmatpush.bf16.msra.mxu0 0
  %1195 = vmatpush.bf16.msra.mxu0 0
  %1196 = vmatpush.bf16.msra.mxu0 %v1184
  %1197 = vmatpush.bf16.msra.mxu0 %v1183
  %1198 = vmatmul.bf16.gmra.mxu0 %v1188
  %v1199 = vpop.f32.mrf.mxu0
  %v1200 = vadd.f32 %v1171, %v1199
  %v1201 = vpop.f32.mrf.mxu0
  %1202 = vdwg.mxu0
  %v1203 = vmax.f32 %v1200, 0.0
  %v1204 = vpack.c.bf16 %v1203, %v1203
  %v1205 = vperm.slane %v1169, 0
  %v1208 = vunpack.c.l.b16 %v1167
  %v1209 = vunpack.c.l.b16 %v1168
  %v1210 = vpack.c.b16 %v1209, %v1208
  %vm1212 = vcmask 130048
  %v1214 = vsel %vm1212, %v1204, 0
  %1216 = vmatpush.bf16.msra.mxu0 0
  %1217 = vmatpush.bf16.msra.mxu0 0
  %1218 = vmatpush.bf16.msra.mxu0 0
  %1219 = vmatpush.bf16.msra.mxu0 0
  %1220 = vmatpush.bf16.msra.mxu0 0
  %1221 = vmatpush.bf16.msra.mxu0 0
  %1222 = vmatpush.bf16.msra.mxu0 0
  %1223 = vmatpush.bf16.msra.mxu0 %v1210
  %1224 = vmatmul.bf16.gmra.mxu0 %v1214
  %v1225 = vpop.f32.mrf.mxu0
  %v1226 = vadd.f32 %v1205, %v1225
  %v1227 = vpop.f32.mrf.mxu0
  %1228 = vdwg.mxu0
  %vm1229 = vcmask 7168
  %1230 = vst.msk [vmem:[%s3] sm:$0xff] %vm1229, %v1226
  // Predicated region
  $region14: #{rul_lstm_forward.1} parent=0 // pred_check
    _
  $region15: #{rul_lstm_forward.1} parent=0 // pred_check_branch
    %1232 = sbr.rel (0) target = $region17
  $region16: #{rul_lstm_forward.1} parent=0 // pred_region
    _
  $region17: #{rul_lstm_forward.1} parent=0 // pred_fallthru
    _
  // Predicated region
  $region18: #{rul_lstm_forward.1} parent=0 // pred_check
    _
  $region19: #{rul_lstm_forward.1} parent=0 // pred_check_branch
    %1234 = sbr.rel (0) target = $region21
  $region20: #{rul_lstm_forward.1} parent=0 // pred_region
    _
  $region21: #{rul_lstm_forward.1} parent=0 // pred_fallthru
    _

</llo_original>
